<compile_context>
chip_gen: v7x
topology: tpu7x:2x2x1
jax: 0.10.0
libtpu: 0.0.40
codegen_flags: <defaults>
</compile_context>

<pallas_src>
import jax
import jax.numpy as jnp
from jax.experimental import pallas as pl
from jax.experimental.pallas import tpu as pltpu


def _round_up(x, m):
    return ((x + m - 1) // m) * m


def _softplus(x):
    # matches torch.nn.Softplus(beta=1, threshold=20)
    return jnp.where(x > 20.0, x, jnp.log1p(jnp.exp(jnp.minimum(x, 20.0))))


def word_bias_kernel(x_ref, tok_ref, w1_ref, wf_ref, out_ref):
    # x_ref  : (Bp, Ep)    embeddings, ones column at index E, zero-padded to Ep
    # tok_ref: (Bp, S)     int32 token ids, 0 = padding
    # w1_ref : (Ep, Hp)    fc1 weight, b1 at row E, rows [E+1,Ep) zero
    # wf_ref : (Hp+Wp, Op) [w2_pad ; word_biases_pad], row Hp (word id 0) = b2
    # out_ref: (Bp, Op)    lane-dense output slab

    # fc1 + softplus (bias applied via the ones column), full f32 MXU path.
    h = _softplus(jnp.dot(x_ref[...], w1_ref[...],
                          preferred_element_type=jnp.float32,
                          precision=jax.lax.Precision.HIGHEST))       # (Bp, Hp)

    tokens = tok_ref[...]                                             # (Bp, S)
    Bp, S = tokens.shape
    Hp = h.shape[1]
    Wp = wf_ref.shape[0] - Hp

    # Per-word counts (one-hot sum over the sequence) accumulated as S cheap
    # 2-D VPU compare+adds on (Bp, Wp) tiles -- no 3-D intermediate, no XLU
    # sublane reduction.  S is static -> the Python loop is fully unrolled.
    lane_iota = jax.lax.broadcasted_iota(jnp.int32, (Bp, Wp), 1)      # cached
    counts = jnp.zeros((Bp, Wp), jnp.float32)
    for s in range(S):
        tok_s = jax.lax.slice_in_dim(tokens, s, s + 1, axis=1)        # (Bp, 1)
        hit = jnp.logical_and(tok_s == lane_iota, tok_s != 0)         # pad mask
        counts = counts + hit.astype(jnp.float32)

    # Column 0 (padding word) never receives counts; set it to 1 so the fc2
    # bias stored in wf_ref row Hp is added exactly once by the matmul.
    counts = jnp.where(lane_iota == 0, jnp.float32(1.0), counts)

    # Fused second stage as two matmuls against static, tile-aligned slices of
    # the stacked weight (Hp is a multiple of 128 -> free views, no concat
    # copy).  Same total K worth of MXU pushes, zero extra VMEM traffic.
    out_ref[...] = (
        jnp.dot(h, wf_ref[:Hp, :],
                preferred_element_type=jnp.float32,
                precision=jax.lax.Precision.HIGHEST)
        + jnp.dot(counts, wf_ref[Hp:, :],
                  preferred_element_type=jnp.float32,
                  precision=jax.lax.Precision.HIGHEST)
    )                                                                 # (Bp, Op)


def word_bias_net(embeddings, tokens, w1, b1, w2, b2, word_biases):
    B, E = embeddings.shape
    H = w1.shape[1]
    O = w2.shape[1]
    W = word_biases.shape[0]

    Bp = _round_up(B, 8)
    Ep = _round_up(E + 1, 128)   # lane-dense fc1 contraction dim
    Hp = _round_up(H, 128)
    Wp = _round_up(W, 128)
    Op = _round_up(O, 128)

    # --- one-time wrapper-side packing (all concats/pads done here, not in-kernel)
    # x augmented with a ones column (fc1 bias rides as row E of w1_aug), then
    # zero-padded to Ep lanes and Bp sublanes.
    x_aug = jnp.concatenate(
        [embeddings.astype(jnp.float32), jnp.ones((B, 1), jnp.float32)], axis=1)
    x_aug = jnp.pad(x_aug, ((0, Bp - B), (0, Ep - (E + 1))))
    tok_p = jnp.pad(tokens.astype(jnp.int32), ((0, Bp - B), (0, 0)))  # pad->id 0

    # fc1 weight: (Ep, Hp), row E = b1, rows [E+1,Ep) and cols [H,Hp) zero.
    # (The padded hidden columns of h become softplus(0)=ln(2); they are killed
    #  by the matching zero rows of w2_p below -- keep that invariant.)
    w1_aug = jnp.concatenate([w1, b1[None, :]], axis=0)
    w1_aug = jnp.pad(w1_aug, ((0, Ep - (E + 1)), (0, Hp - H)))

    # Fused second-stage weight: rows [0,Hp) -> fc2 weight (zero-padded), rows
    # [Hp,Hp+Wp) -> word-bias table. Row Hp+0 (padding word) carries b2.
    w2_p = jnp.pad(w2, ((0, Hp - H), (0, Op - O)))
    wb_p = jnp.pad(word_biases, ((0, Wp - W), (0, Op - O)))
    wb_p = wb_p.at[0].set(jnp.pad(b2, (0, Op - O)))
    w_fused = jnp.concatenate([w2_p, wb_p], axis=0)                   # (Hp+Wp,Op)

    vmem = pl.BlockSpec(memory_space=pltpu.MemorySpace.VMEM)
    out = pl.pallas_call(
        word_bias_kernel,
        out_shape=jax.ShapeDtypeStruct((Bp, Op), jnp.float32),
        in_specs=[vmem] * 4,
        out_specs=vmem,
    )(x_aug, tok_p, w1_aug, w_fused)
    return out[:B, :O]


def reference(embeddings, tokens, w1, b1, w2, b2, word_biases):
    # Pure-JAX mirror of the PyTorch forward (dropout p=0 is identity).
    x = embeddings.reshape(-1, w1.shape[0])
    h = _softplus(x @ w1 + b1)
    wb = word_biases[tokens]                                          # (B, S, O)
    mask = (tokens != 0).astype(jnp.float32)[:, :, None]
    wb_sum = (wb * mask).sum(axis=1)
    return h @ w2 + b2 + wb_sum


if __name__ == "__main__":
    # small shapes consistent with the module's forward
    B, S = 4, 8            # batch, seq length (tokens_sorted)
    E = 32                 # text_embedding_dim
    H = 32                 # hidden_dim
    O = 4                  # output_dim
    W = 64                 # word_num

    key = jax.random.PRNGKey(0)
    k_emb, k_tok, k_w1, k_b1, k_w2, k_b2, k_wb = jax.random.split(key, 7)

    embeddings = jax.random.normal(k_emb, (B, E), dtype=jnp.float32)
    tokens = jax.random.randint(k_tok, (B, S), 0, W, dtype=jnp.int32)

    # deterministic parameter init (Linear-like uniform, Embedding uniform(-1e-3, 1e-3))
    w1 = jax.random.uniform(k_w1, (E, H), jnp.float32, -1.0 / E**0.5, 1.0 / E**0.5)
    b1 = jax.random.uniform(k_b1, (H,), jnp.float32, -1.0 / E**0.5, 1.0 / E**0.5)
    w2 = jax.random.uniform(k_w2, (H, O), jnp.float32, -1.0 / H**0.5, 1.0 / H**0.5)
    b2 = jax.random.uniform(k_b2, (O,), jnp.float32, -1.0 / H**0.5, 1.0 / H**0.5)
    word_biases = jax.random.uniform(k_wb, (W, O), jnp.float32, -0.001, 0.001)

    out = word_bias_net(embeddings, tokens, w1, b1, w2, b2, word_biases)
    out = jax.block_until_ready(out)

    ref = reference(embeddings, tokens, w1, b1, w2, b2, word_biases)
    assert out.shape == (B, O)
    assert jnp.allclose(out, ref, atol=1e-5, rtol=1e-5), (out, ref)
    print("KERNEL_OK")
</pallas_src>

<mosaic_0001>
module attributes {stable_mosaic.version = 11 : i64} {
  func.func @word_bias_kernel(%arg0: memref<8x128xf32, #tpu.memory_space<vmem>>, %arg1: memref<8x8xi32, #tpu.memory_space<vmem>>, %arg2: memref<128x128xf32, #tpu.memory_space<vmem>>, %arg3: memref<256x128xf32, #tpu.memory_space<vmem>>, %arg4: memref<8x128xf32, #tpu.memory_space<vmem>>) attributes {dimension_semantics = [], scalar_prefetch = 0 : i64, scratch_operands = 0 : i64, tpu.core_type = #tpu.core_type<tc>} {
    %c0 = arith.constant 0 : index
    %c0_0 = arith.constant 0 : index
    %0 = vector.load %arg0[%c0, %c0_0] : memref<8x128xf32, #tpu.memory_space<vmem>>, vector<8x128xf32>
    %c0_1 = arith.constant 0 : index
    %c0_2 = arith.constant 0 : index
    %1 = vector.load %arg2[%c0_1, %c0_2] : memref<128x128xf32, #tpu.memory_space<vmem>>, vector<128x128xf32>
    %cst = arith.constant dense<0.000000e+00> : vector<8x128xf32>
    %2 = tpu.matmul %0, %1, %cst {dimension_numbers = #tpu.dot_dimension_numbers<[1], [0], [0], [1], [0, 0, 1, 1], [], []>, precision = #tpu.contract_precision<fp32>} : vector<8x128xf32>, vector<128x128xf32>, vector<8x128xf32> -> vector<8x128xf32>
    %cst_3 = arith.constant 2.000000e+01 : f32
    %3 = vector.broadcast %cst_3 : f32 to vector<8x128xf32>
    %4 = arith.cmpf ogt, %2, %3 : vector<8x128xf32>
    %cst_4 = arith.constant 2.000000e+01 : f32
    %5 = vector.broadcast %cst_4 : f32 to vector<8x128xf32>
    %6 = arith.minimumf %2, %5 : vector<8x128xf32>
    %7 = math.exp %6 : vector<8x128xf32>
    %8 = math.log1p %7 : vector<8x128xf32>
    %9 = arith.select %4, %2, %8 : vector<8x128xi1>, vector<8x128xf32>
    %c0_5 = arith.constant 0 : index
    %c0_6 = arith.constant 0 : index
    %10 = vector.load %arg1[%c0_5, %c0_6] : memref<8x8xi32, #tpu.memory_space<vmem>>, vector<8x8xi32>
    %11 = tpu.iota {dimensions = array<i32: 1>} : vector<8x128xi32>
    %cst_7 = arith.constant 0.000000e+00 : f32
    %12 = vector.broadcast %cst_7 : f32 to vector<8x128xf32>
    %13 = vector.extract_strided_slice %10 {offsets = [0, 0], sizes = [8, 1], strides = [1, 1]} : vector<8x8xi32> to vector<8x1xi32>
    %14 = vector.broadcast %13 : vector<8x1xi32> to vector<8x128xi32>
    %15 = arith.cmpi eq, %14, %11 : vector<8x128xi32>
    %c0_i32 = arith.constant 0 : i32
    %16 = vector.broadcast %c0_i32 : i32 to vector<8x1xi32>
    %17 = arith.cmpi ne, %13, %16 : vector<8x1xi32>
    %18 = vector.broadcast %17 : vector<8x1xi1> to vector<8x128xi1>
    %19 = arith.andi %15, %18 : vector<8x128xi1>
    %20 = arith.extui %19 : vector<8x128xi1> to vector<8x128xi32>
    %21 = arith.sitofp %20 : vector<8x128xi32> to vector<8x128xf32>
    %22 = arith.addf %12, %21 : vector<8x128xf32>
    %23 = vector.extract_strided_slice %10 {offsets = [0, 1], sizes = [8, 1], strides = [1, 1]} : vector<8x8xi32> to vector<8x1xi32>
    %24 = vector.broadcast %23 : vector<8x1xi32> to vector<8x128xi32>
    %25 = arith.cmpi eq, %24, %11 : vector<8x128xi32>
    %c0_i32_8 = arith.constant 0 : i32
    %26 = vector.broadcast %c0_i32_8 : i32 to vector<8x1xi32>
    %27 = arith.cmpi ne, %23, %26 : vector<8x1xi32>
    %28 = vector.broadcast %27 : vector<8x1xi1> to vector<8x128xi1>
    %29 = arith.andi %25, %28 : vector<8x128xi1>
    %30 = arith.extui %29 : vector<8x128xi1> to vector<8x128xi32>
    %31 = arith.sitofp %30 : vector<8x128xi32> to vector<8x128xf32>
    %32 = arith.addf %22, %31 : vector<8x128xf32>
    %33 = vector.extract_strided_slice %10 {offsets = [0, 2], sizes = [8, 1], strides = [1, 1]} : vector<8x8xi32> to vector<8x1xi32>
    %34 = vector.broadcast %33 : vector<8x1xi32> to vector<8x128xi32>
    %35 = arith.cmpi eq, %34, %11 : vector<8x128xi32>
    %c0_i32_9 = arith.constant 0 : i32
    %36 = vector.broadcast %c0_i32_9 : i32 to vector<8x1xi32>
    %37 = arith.cmpi ne, %33, %36 : vector<8x1xi32>
    %38 = vector.broadcast %37 : vector<8x1xi1> to vector<8x128xi1>
    %39 = arith.andi %35, %38 : vector<8x128xi1>
    %40 = arith.extui %39 : vector<8x128xi1> to vector<8x128xi32>
    %41 = arith.sitofp %40 : vector<8x128xi32> to vector<8x128xf32>
    %42 = arith.addf %32, %41 : vector<8x128xf32>
    %43 = vector.extract_strided_slice %10 {offsets = [0, 3], sizes = [8, 1], strides = [1, 1]} : vector<8x8xi32> to vector<8x1xi32>
    %44 = vector.broadcast %43 : vector<8x1xi32> to vector<8x128xi32>
    %45 = arith.cmpi eq, %44, %11 : vector<8x128xi32>
    %c0_i32_10 = arith.constant 0 : i32
    %46 = vector.broadcast %c0_i32_10 : i32 to vector<8x1xi32>
    %47 = arith.cmpi ne, %43, %46 : vector<8x1xi32>
    %48 = vector.broadcast %47 : vector<8x1xi1> to vector<8x128xi1>
    %49 = arith.andi %45, %48 : vector<8x128xi1>
    %50 = arith.extui %49 : vector<8x128xi1> to vector<8x128xi32>
    %51 = arith.sitofp %50 : vector<8x128xi32> to vector<8x128xf32>
    %52 = arith.addf %42, %51 : vector<8x128xf32>
    %53 = vector.extract_strided_slice %10 {offsets = [0, 4], sizes = [8, 1], strides = [1, 1]} : vector<8x8xi32> to vector<8x1xi32>
    %54 = vector.broadcast %53 : vector<8x1xi32> to vector<8x128xi32>
    %55 = arith.cmpi eq, %54, %11 : vector<8x128xi32>
    %c0_i32_11 = arith.constant 0 : i32
    %56 = vector.broadcast %c0_i32_11 : i32 to vector<8x1xi32>
    %57 = arith.cmpi ne, %53, %56 : vector<8x1xi32>
    %58 = vector.broadcast %57 : vector<8x1xi1> to vector<8x128xi1>
    %59 = arith.andi %55, %58 : vector<8x128xi1>
    %60 = arith.extui %59 : vector<8x128xi1> to vector<8x128xi32>
    %61 = arith.sitofp %60 : vector<8x128xi32> to vector<8x128xf32>
    %62 = arith.addf %52, %61 : vector<8x128xf32>
    %63 = vector.extract_strided_slice %10 {offsets = [0, 5], sizes = [8, 1], strides = [1, 1]} : vector<8x8xi32> to vector<8x1xi32>
    %64 = vector.broadcast %63 : vector<8x1xi32> to vector<8x128xi32>
    %65 = arith.cmpi eq, %64, %11 : vector<8x128xi32>
    %c0_i32_12 = arith.constant 0 : i32
    %66 = vector.broadcast %c0_i32_12 : i32 to vector<8x1xi32>
    %67 = arith.cmpi ne, %63, %66 : vector<8x1xi32>
    %68 = vector.broadcast %67 : vector<8x1xi1> to vector<8x128xi1>
    %69 = arith.andi %65, %68 : vector<8x128xi1>
    %70 = arith.extui %69 : vector<8x128xi1> to vector<8x128xi32>
    %71 = arith.sitofp %70 : vector<8x128xi32> to vector<8x128xf32>
    %72 = arith.addf %62, %71 : vector<8x128xf32>
    %73 = vector.extract_strided_slice %10 {offsets = [0, 6], sizes = [8, 1], strides = [1, 1]} : vector<8x8xi32> to vector<8x1xi32>
    %74 = vector.broadcast %73 : vector<8x1xi32> to vector<8x128xi32>
    %75 = arith.cmpi eq, %74, %11 : vector<8x128xi32>
    %c0_i32_13 = arith.constant 0 : i32
    %76 = vector.broadcast %c0_i32_13 : i32 to vector<8x1xi32>
    %77 = arith.cmpi ne, %73, %76 : vector<8x1xi32>
    %78 = vector.broadcast %77 : vector<8x1xi1> to vector<8x128xi1>
    %79 = arith.andi %75, %78 : vector<8x128xi1>
    %80 = arith.extui %79 : vector<8x128xi1> to vector<8x128xi32>
    %81 = arith.sitofp %80 : vector<8x128xi32> to vector<8x128xf32>
    %82 = arith.addf %72, %81 : vector<8x128xf32>
    %83 = vector.extract_strided_slice %10 {offsets = [0, 7], sizes = [8, 1], strides = [1, 1]} : vector<8x8xi32> to vector<8x1xi32>
    %84 = vector.broadcast %83 : vector<8x1xi32> to vector<8x128xi32>
    %85 = arith.cmpi eq, %84, %11 : vector<8x128xi32>
    %c0_i32_14 = arith.constant 0 : i32
    %86 = vector.broadcast %c0_i32_14 : i32 to vector<8x1xi32>
    %87 = arith.cmpi ne, %83, %86 : vector<8x1xi32>
    %88 = vector.broadcast %87 : vector<8x1xi1> to vector<8x128xi1>
    %89 = arith.andi %85, %88 : vector<8x128xi1>
    %90 = arith.extui %89 : vector<8x128xi1> to vector<8x128xi32>
    %91 = arith.sitofp %90 : vector<8x128xi32> to vector<8x128xf32>
    %92 = arith.addf %82, %91 : vector<8x128xf32>
    %c0_i32_15 = arith.constant 0 : i32
    %93 = vector.broadcast %c0_i32_15 : i32 to vector<8x128xi32>
    %94 = arith.cmpi eq, %11, %93 : vector<8x128xi32>
    %cst_16 = arith.constant 1.000000e+00 : f32
    %95 = vector.broadcast %cst_16 : f32 to vector<8x128xf32>
    %96 = arith.select %94, %95, %92 : vector<8x128xi1>, vector<8x128xf32>
    %c0_17 = arith.constant 0 : index
    %c0_18 = arith.constant 0 : index
    %97 = vector.load %arg3[%c0_17, %c0_18] : memref<256x128xf32, #tpu.memory_space<vmem>>, vector<128x128xf32>
    %cst_19 = arith.constant dense<0.000000e+00> : vector<8x128xf32>
    %98 = tpu.matmul %9, %97, %cst_19 {dimension_numbers = #tpu.dot_dimension_numbers<[1], [0], [0], [1], [0, 0, 1, 1], [], []>, precision = #tpu.contract_precision<fp32>} : vector<8x128xf32>, vector<128x128xf32>, vector<8x128xf32> -> vector<8x128xf32>
    %c128 = arith.constant 128 : index
    %c0_20 = arith.constant 0 : index
    %99 = vector.load %arg3[%c128, %c0_20] : memref<256x128xf32, #tpu.memory_space<vmem>>, vector<128x128xf32>
    %cst_21 = arith.constant dense<0.000000e+00> : vector<8x128xf32>
    %100 = tpu.matmul %96, %99, %cst_21 {dimension_numbers = #tpu.dot_dimension_numbers<[1], [0], [0], [1], [0, 0, 1, 1], [], []>, precision = #tpu.contract_precision<fp32>} : vector<8x128xf32>, vector<128x128xf32>, vector<8x128xf32> -> vector<8x128xf32>
    %101 = arith.addf %98, %100 : vector<8x128xf32>
    %c0_22 = arith.constant 0 : index
    %c0_23 = arith.constant 0 : index
    %102 = vector.load %arg4[%c0_22, %c0_23] : memref<8x128xf32, #tpu.memory_space<vmem>>, vector<8x128xf32>
    tpu.vector_store %arg4[%c0_22, %c0_23], %101 {strides = array<i32>} : memref<8x128xf32, #tpu.memory_space<vmem>>, vector<8x128xf32>,
    return
  }
}

</mosaic_0001>

<llo_original>
// kernel: tpu_custom_call.1
$region0: #{tpu_custom_call.1}
  #allocation0 [shape = 'u32[]', space=smem, size = 0x4, offset = 0x4, fixed_abs, tag = 'smem constant byte address 0x4 - core index']
  #allocation1 [shape = 'u32[144,128]{1,0:T(1,128)}', space=vmem, size = 0x12000, scoped, tag = 'internal scratch']
  %s0 = inlined_call_operand.hbm [shape: f32[8,128], index: 0, kind: input, shape index: {}]
  %s1 = inlined_call_operand.hbm [shape: s32[8,8], index: 1, kind: input, shape index: {}]
  %s2 = inlined_call_operand.hbm [shape: f32[128,128], index: 2, kind: input, shape index: {}]
  %s3 = inlined_call_operand.hbm [shape: f32[256,128], index: 3, kind: input, shape index: {}]
  %s4 = inlined_call_operand.hbm [shape: f32[8,128], index: 4, kind: output, shape index: {}]
  %s5 = sld [smem:[#allocation0]]
  $region42: #{tpu_custom_call.1} parent=0
    _
  %s7 = ssub.s32 1, %s5
  %s8 = scalar_select 0, %s7, %s5
  $region1: #{tpu_custom_call.1} parent=0
    #allocation2 [shape = 'u8[4096]{0}', space=vmem, size = 0x1000, scoped, tag = 'input window, operand 0, single buffered']
    #allocation3 [shape = 's32[1]{0}', space=sflag, size = 0x4, scoped, tag = 'scoped memory for tpu_custom_call.1']
    #allocation4 [shape = 's32[1]{0}', space=sflag, size = 0x4, scoped, tag = 'scoped memory for tpu_custom_call.1']
    #allocation5 [shape = 'u8[4096]{0}', space=vmem, size = 0x1000, scoped, tag = 'input window, operand 1, single buffered']
    #allocation6 [shape = 's32[1]{0}', space=sflag, size = 0x4, scoped, tag = 'scoped memory for tpu_custom_call.1']
    #allocation7 [shape = 'u8[65536]{0}', space=vmem, size = 0x10000, scoped, tag = 'input window, operand 2, single buffered']
    #allocation8 [shape = 'u8[131072]{0}', space=vmem, size = 0x20000, scoped, tag = 'input window, operand 3, single buffered']
    #allocation9 [shape = 's32[1]{0}', space=sflag, size = 0x4, scoped, tag = 'scoped memory for tpu_custom_call.1']
    #allocation10 [shape = 'u8[4096]{0}', space=vmem, size = 0x1000, scoped, tag = 'output window, operand 0, single buffered']
    %9 = vsyncpa [#allocation3], 0
    %10 = vsyncpa [#allocation6], 0
    %11 = vsyncpa [#allocation9], 0
    %12 = vsyncpa [#allocation4], 0
    // Predicated region
    $region2: #{tpu_custom_call.1} parent=1 // pred_check
      _
    $region3: #{tpu_custom_call.1} parent=1 // pred_check_branch
      %14 = sbr.rel (0) target = $region5
    $region4: #{tpu_custom_call.1} parent=1 // pred_region
      %s16 = ssub.s32 128, 128
      %17 = vsyncadd [#allocation3], %s16
      %s19 = sshll.u32 [#allocation2], 4
      %s20 = int_to_ptr.vmem [resolvable:$true] %s19
      %22 = dma.hbm_to_vmem [thread:$0]  %s0, 128, %s20, [#allocation3]
    $region5: #{tpu_custom_call.1} parent=1 // pred_fallthru
      _
    // Predicated region
    $region6: #{tpu_custom_call.1} parent=1 // pred_check
      _
    $region7: #{tpu_custom_call.1} parent=1 // pred_check_branch
      %24 = sbr.rel (0) target = $region9
    $region8: #{tpu_custom_call.1} parent=1 // pred_region
      %s26 = ssub.s32 128, 128
      %27 = vsyncadd [#allocation6], %s26
      %s29 = sshll.u32 [#allocation5], 4
      %s30 = int_to_ptr.vmem [resolvable:$true] %s29
      %32 = dma.hbm_to_vmem [thread:$0]  %s1, 128, %s30, [#allocation6]
    $region9: #{tpu_custom_call.1} parent=1 // pred_fallthru
      _
    // Predicated region
    $region10: #{tpu_custom_call.1} parent=1 // pred_check
      _
    $region11: #{tpu_custom_call.1} parent=1 // pred_check_branch
      %34 = sbr.rel (0) target = $region13
    $region12: #{tpu_custom_call.1} parent=1 // pred_region
      %s36 = ssub.s32 2048, 2048
      %37 = vsyncadd [#allocation6], %s36
      %s38 = sshll.u32 [#allocation7], 4
      %s39 = int_to_ptr.vmem [resolvable:$true] %s38
      %44 = dma.hbm_to_vmem [thread:$0]  %s2, 2048, %s39, [#allocation6], 128, 128, 8
    $region13: #{tpu_custom_call.1} parent=1 // pred_fallthru
      _
    // Predicated region
    $region14: #{tpu_custom_call.1} parent=1 // pred_check
      _
    $region15: #{tpu_custom_call.1} parent=1 // pred_check_branch
      %46 = sbr.rel (0) target = $region17
    $region16: #{tpu_custom_call.1} parent=1 // pred_region
      %s48 = ssub.s32 4096, 4096
      %49 = vsyncadd [#allocation9], %s48
      %s50 = sshll.u32 [#allocation8], 4
      %s51 = int_to_ptr.vmem [resolvable:$true] %s50
      %56 = dma.hbm_to_vmem [thread:$0]  %s3, 4096, %s51, [#allocation9], 128, 128, 8
    $region17: #{tpu_custom_call.1} parent=1 // pred_fallthru
      _
    // Predicated region
    $region18: #{tpu_custom_call.1} parent=1 // pred_check
      _
    $region19: #{tpu_custom_call.1} parent=1 // pred_check_branch
      %58 = sbr.rel (0) target = $region21
    $region20: #{tpu_custom_call.1} parent=1 // pred_region
      %59 = dma.done [#allocation3], 128
    $region21: #{tpu_custom_call.1} parent=1 // pred_fallthru
      _
    // Predicated region
    $region22: #{tpu_custom_call.1} parent=1 // pred_check
      _
    $region23: #{tpu_custom_call.1} parent=1 // pred_check_branch
      %61 = sbr.rel (0) target = $region25
    $region24: #{tpu_custom_call.1} parent=1 // pred_region
      %62 = dma.done [#allocation6], 128
    $region25: #{tpu_custom_call.1} parent=1 // pred_fallthru
      _
    // Predicated region
    $region26: #{tpu_custom_call.1} parent=1 // pred_check
      _
    $region27: #{tpu_custom_call.1} parent=1 // pred_check_branch
      %64 = sbr.rel (0) target = $region29
    $region28: #{tpu_custom_call.1} parent=1 // pred_region
      %65 = dma.done [#allocation6], 2048
    $region29: #{tpu_custom_call.1} parent=1 // pred_fallthru
      _
    // Predicated region
    $region30: #{tpu_custom_call.1} parent=1 // pred_check
      _
    $region31: #{tpu_custom_call.1} parent=1 // pred_check_branch
      %67 = sbr.rel (0) target = $region33
    $region32: #{tpu_custom_call.1} parent=1 // pred_region
      %68 = dma.done [#allocation9], 4096
    $region33: #{tpu_custom_call.1} parent=1 // pred_fallthru
      _
    %v69 = vld [vmem:[#allocation2] sm:$0xff]
    %v70 = vld [vmem:[#allocation7] sm:$0xff]
    %v71 = vld [vmem:[#allocation7 + $0x8] sm:$0xff]
    %v72 = vld [vmem:[#allocation7 + $0x10] sm:$0xff]
    %v73 = vld [vmem:[#allocation7 + $0x18] sm:$0xff]
    %v74 = vld [vmem:[#allocation7 + $0x20] sm:$0xff]
    %v75 = vld [vmem:[#allocation7 + $0x28] sm:$0xff]
    %v76 = vld [vmem:[#allocation7 + $0x30] sm:$0xff]
    %v77 = vld [vmem:[#allocation7 + $0x38] sm:$0xff]
    %v78 = vld [vmem:[#allocation7 + $0x40] sm:$0xff]
    %v79 = vld [vmem:[#allocation7 + $0x48] sm:$0xff]
    %v80 = vld [vmem:[#allocation7 + $0x50] sm:$0xff]
    %v81 = vld [vmem:[#allocation7 + $0x58] sm:$0xff]
    %v82 = vld [vmem:[#allocation7 + $0x60] sm:$0xff]
    %v83 = vld [vmem:[#allocation7 + $0x68] sm:$0xff]
    %v84 = vld [vmem:[#allocation7 + $0x70] sm:$0xff]
    %v85 = vld [vmem:[#allocation7 + $0x78] sm:$0xff]
    %86 = vmatprep.subr.mxu0 0.0
    %v87 = vand.u32 %v70, 4294901760
    %88 = vmatpush1.msra.mxu0 %v87
    %89 = vmatprep.subr.mxu0 0.0
    %v90 = vand.u32 %v71, 4294901760
    %91 = vmatpush1.msra.mxu0 %v90
    %92 = vmatprep.subr.mxu0 0.0
    %v93 = vand.u32 %v72, 4294901760
    %94 = vmatpush1.msra.mxu0 %v93
    %95 = vmatprep.subr.mxu0 0.0
    %v96 = vand.u32 %v73, 4294901760
    %97 = vmatpush1.msra.mxu0 %v96
    %98 = vmatprep.subr.mxu0 0.0
    %v99 = vand.u32 %v74, 4294901760
    %100 = vmatpush1.msra.mxu0 %v99
    %101 = vmatprep.subr.mxu0 0.0
    %v102 = vand.u32 %v75, 4294901760
    %103 = vmatpush1.msra.mxu0 %v102
    %104 = vmatprep.subr.mxu0 0.0
    %v105 = vand.u32 %v76, 4294901760
    %106 = vmatpush1.msra.mxu0 %v105
    %107 = vmatprep.subr.mxu0 0.0
    %v108 = vand.u32 %v77, 4294901760
    %109 = vmatpush1.msra.mxu0 %v108
    %110 = vmatprep.subr.mxu0 0.0
    %v111 = vand.u32 %v78, 4294901760
    %112 = vmatpush1.msra.mxu0 %v111
    %113 = vmatprep.subr.mxu0 0.0
    %v114 = vand.u32 %v79, 4294901760
    %115 = vmatpush1.msra.mxu0 %v114
    %116 = vmatprep.subr.mxu0 0.0
    %v117 = vand.u32 %v80, 4294901760
    %118 = vmatpush1.msra.mxu0 %v117
    %119 = vmatprep.subr.mxu0 0.0
    %v120 = vand.u32 %v81, 4294901760
    %121 = vmatpush1.msra.mxu0 %v120
    %122 = vmatprep.subr.mxu0 0.0
    %v123 = vand.u32 %v82, 4294901760
    %124 = vmatpush1.msra.mxu0 %v123
    %125 = vmatprep.subr.mxu0 0.0
    %v126 = vand.u32 %v83, 4294901760
    %127 = vmatpush1.msra.mxu0 %v126
    %128 = vmatprep.subr.mxu0 0.0
    %v129 = vand.u32 %v84, 4294901760
    %130 = vmatpush1.msra.mxu0 %v129
    %131 = vmatprep.subr.mxu0 0.0
    %v132 = vand.u32 %v85, 4294901760
    %133 = vmatpush1.msra.mxu0 %v132
    %134 = vmatprep.subr.mxu0 0.0
    %135 = vmatpush1.msra.mxu0 0.0
    %136 = vmatprep.subr.mxu0 0.0
    %137 = vmatpush1.msra.mxu0 0.0
    %138 = vmatprep.subr.mxu0 0.0
    %139 = vmatpush1.msra.mxu0 0.0
    %140 = vmatprep.subr.mxu0 0.0
    %141 = vmatpush1.msra.mxu0 0.0
    %142 = vmatprep.subr.mxu0 0.0
    %143 = vmatpush1.msra.mxu0 0.0
    %144 = vmatprep.subr.mxu0 0.0
    %145 = vmatpush1.msra.mxu0 0.0
    %146 = vmatprep.subr.mxu0 0.0
    %147 = vmatpush1.msra.mxu0 0.0
    %148 = vmatprep.subr.mxu0 0.0
    %149 = vmatpush1.msra.mxu0 0.0
    %150 = vmatprep.subr.mxu0 0.0
    %151 = vmatpush1.msra.mxu0 0.0
    %152 = vmatprep.subr.mxu0 0.0
    %153 = vmatpush1.msra.mxu0 0.0
    %154 = vmatprep.subr.mxu0 0.0
    %155 = vmatpush1.msra.mxu0 0.0
    %156 = vmatprep.subr.mxu0 0.0
    %157 = vmatpush1.msra.mxu0 0.0
    %158 = vmatprep.subr.mxu0 0.0
    %159 = vmatpush1.msra.mxu0 0.0
    %160 = vmatprep.subr.mxu0 0.0
    %161 = vmatpush1.msra.mxu0 0.0
    %162 = vmatprep.subr.mxu0 0.0
    %163 = vmatpush1.msra.mxu0 0.0
    %164 = vmatprep.subr.mxu0 0.0
    %165 = vmatpush1.msra.mxu0 0.0
    %166 = vmatprep.mubr.f32.mxu0 0.0
    %v167 = vand.u32 %v69, 4294901760
    %v168 = vsub.f32 %v69, %v167
    %v169 = vand.u32 %v168, 4294901760
    %v170 = vsub.f32 %v168, %v169
    %v171 = vand.u32 %v170, 4294901760
    %172 = vmatmul.mubr.f32.gmra.mrb[0].mxu0 %v171
    %v173 = vpop.f32.mrb[0].mxu0
    %v174 = vadd.f32 0.0, %v173
    %v175 = vpop.f32.mrb[0].mxu0
    %176 = vdwg.mxu0
    %177 = vmatprep.subr.mxu0 0.0
    %v178 = vand.u32 %v70, 4294901760
    %v179 = vsub.f32 %v70, %v178
    %v180 = vand.u32 %v179, 4294901760
    %v181 = vsub.f32 %v179, %v180
    %v182 = vand.u32 %v181, 4294901760
    %183 = vmatpush1.msra.mxu0 %v182
    %184 = vmatprep.subr.mxu0 0.0
    %v185 = vand.u32 %v71, 4294901760
    %v186 = vsub.f32 %v71, %v185
    %v187 = vand.u32 %v186, 4294901760
    %v188 = vsub.f32 %v186, %v187
    %v189 = vand.u32 %v188, 4294901760
    %190 = vmatpush1.msra.mxu0 %v189
    %191 = vmatprep.subr.mxu0 0.0
    %v192 = vand.u32 %v72, 4294901760
    %v193 = vsub.f32 %v72, %v192
    %v194 = vand.u32 %v193, 4294901760
    %v195 = vsub.f32 %v193, %v194
    %v196 = vand.u32 %v195, 4294901760
    %197 = vmatpush1.msra.mxu0 %v196
    %198 = vmatprep.subr.mxu0 0.0
    %v199 = vand.u32 %v73, 4294901760
    %v200 = vsub.f32 %v73, %v199
    %v201 = vand.u32 %v200, 4294901760
    %v202 = vsub.f32 %v200, %v201
    %v203 = vand.u32 %v202, 4294901760
    %204 = vmatpush1.msra.mxu0 %v203
    %205 = vmatprep.subr.mxu0 0.0
    %v206 = vand.u32 %v74, 4294901760
    %v207 = vsub.f32 %v74, %v206
    %v208 = vand.u32 %v207, 4294901760
    %v209 = vsub.f32 %v207, %v208
    %v210 = vand.u32 %v209, 4294901760
    %211 = vmatpush1.msra.mxu0 %v210
    %212 = vmatprep.subr.mxu0 0.0
    %v213 = vand.u32 %v75, 4294901760
    %v214 = vsub.f32 %v75, %v213
    %v215 = vand.u32 %v214, 4294901760
    %v216 = vsub.f32 %v214, %v215
    %v217 = vand.u32 %v216, 4294901760
    %218 = vmatpush1.msra.mxu0 %v217
    %219 = vmatprep.subr.mxu0 0.0
    %v220 = vand.u32 %v76, 4294901760
    %v221 = vsub.f32 %v76, %v220
    %v222 = vand.u32 %v221, 4294901760
    %v223 = vsub.f32 %v221, %v222
    %v224 = vand.u32 %v223, 4294901760
    %225 = vmatpush1.msra.mxu0 %v224
    %226 = vmatprep.subr.mxu0 0.0
    %v227 = vand.u32 %v77, 4294901760
    %v228 = vsub.f32 %v77, %v227
    %v229 = vand.u32 %v228, 4294901760
    %v230 = vsub.f32 %v228, %v229
    %v231 = vand.u32 %v230, 4294901760
    %232 = vmatpush1.msra.mxu0 %v231
    %233 = vmatprep.subr.mxu0 0.0
    %v234 = vand.u32 %v78, 4294901760
    %v235 = vsub.f32 %v78, %v234
    %v236 = vand.u32 %v235, 4294901760
    %v237 = vsub.f32 %v235, %v236
    %v238 = vand.u32 %v237, 4294901760
    %239 = vmatpush1.msra.mxu0 %v238
    %240 = vmatprep.subr.mxu0 0.0
    %v241 = vand.u32 %v79, 4294901760
    %v242 = vsub.f32 %v79, %v241
    %v243 = vand.u32 %v242, 4294901760
    %v244 = vsub.f32 %v242, %v243
    %v245 = vand.u32 %v244, 4294901760
    %246 = vmatpush1.msra.mxu0 %v245
    %247 = vmatprep.subr.mxu0 0.0
    %v248 = vand.u32 %v80, 4294901760
    %v249 = vsub.f32 %v80, %v248
    %v250 = vand.u32 %v249, 4294901760
    %v251 = vsub.f32 %v249, %v250
    %v252 = vand.u32 %v251, 4294901760
    %253 = vmatpush1.msra.mxu0 %v252
    %254 = vmatprep.subr.mxu0 0.0
    %v255 = vand.u32 %v81, 4294901760
    %v256 = vsub.f32 %v81, %v255
    %v257 = vand.u32 %v256, 4294901760
    %v258 = vsub.f32 %v256, %v257
    %v259 = vand.u32 %v258, 4294901760
    %260 = vmatpush1.msra.mxu0 %v259
    %261 = vmatprep.subr.mxu0 0.0
    %v262 = vand.u32 %v82, 4294901760
    %v263 = vsub.f32 %v82, %v262
    %v264 = vand.u32 %v263, 4294901760
    %v265 = vsub.f32 %v263, %v264
    %v266 = vand.u32 %v265, 4294901760
    %267 = vmatpush1.msra.mxu0 %v266
    %268 = vmatprep.subr.mxu0 0.0
    %v269 = vand.u32 %v83, 4294901760
    %v270 = vsub.f32 %v83, %v269
    %v271 = vand.u32 %v270, 4294901760
    %v272 = vsub.f32 %v270, %v271
    %v273 = vand.u32 %v272, 4294901760
    %274 = vmatpush1.msra.mxu0 %v273
    %275 = vmatprep.subr.mxu0 0.0
    %v276 = vand.u32 %v84, 4294901760
    %v277 = vsub.f32 %v84, %v276
    %v278 = vand.u32 %v277, 4294901760
    %v279 = vsub.f32 %v277, %v278
    %v280 = vand.u32 %v279, 4294901760
    %281 = vmatpush1.msra.mxu0 %v280
    %282 = vmatprep.subr.mxu0 0.0
    %v283 = vand.u32 %v85, 4294901760
    %v284 = vsub.f32 %v85, %v283
    %v285 = vand.u32 %v284, 4294901760
    %v286 = vsub.f32 %v284, %v285
    %v287 = vand.u32 %v286, 4294901760
    %288 = vmatpush1.msra.mxu0 %v287
    %289 = vmatprep.subr.mxu0 0.0
    %290 = vmatpush1.msra.mxu0 0.0
    %291 = vmatprep.subr.mxu0 0.0
    %292 = vmatpush1.msra.mxu0 0.0
    %293 = vmatprep.subr.mxu0 0.0
    %294 = vmatpush1.msra.mxu0 0.0
    %295 = vmatprep.subr.mxu0 0.0
    %296 = vmatpush1.msra.mxu0 0.0
    %297 = vmatprep.subr.mxu0 0.0
    %298 = vmatpush1.msra.mxu0 0.0
    %299 = vmatprep.subr.mxu0 0.0
    %300 = vmatpush1.msra.mxu0 0.0
    %301 = vmatprep.subr.mxu0 0.0
    %302 = vmatpush1.msra.mxu0 0.0
    %303 = vmatprep.subr.mxu0 0.0
    %304 = vmatpush1.msra.mxu0 0.0
    %305 = vmatprep.subr.mxu0 0.0
    %306 = vmatpush1.msra.mxu0 0.0
    %307 = vmatprep.subr.mxu0 0.0
    %308 = vmatpush1.msra.mxu0 0.0
    %309 = vmatprep.subr.mxu0 0.0
    %310 = vmatpush1.msra.mxu0 0.0
    %311 = vmatprep.subr.mxu0 0.0
    %312 = vmatpush1.msra.mxu0 0.0
    %313 = vmatprep.subr.mxu0 0.0
    %314 = vmatpush1.msra.mxu0 0.0
    %315 = vmatprep.subr.mxu0 0.0
    %316 = vmatpush1.msra.mxu0 0.0
    %317 = vmatprep.subr.mxu0 0.0
    %318 = vmatpush1.msra.mxu0 0.0
    %319 = vmatprep.subr.mxu0 0.0
    %320 = vmatpush1.msra.mxu0 0.0
    %321 = vmatprep.mubr.f32.mxu0 0.0
    %v322 = vand.u32 %v69, 4294901760
    %323 = vmatmul.mubr.f32.gmra.mrb[0].mxu0 %v322
    %v324 = vpop.f32.mrb[0].mxu0
    %v325 = vadd.f32 %v174, %v324
    %v326 = vpop.f32.mrb[0].mxu0
    %327 = vdwg.mxu0
    %328 = vmatprep.subr.mxu0 0.0
    %v329 = vand.u32 %v70, 4294901760
    %v330 = vsub.f32 %v70, %v329
    %331 = vmatpush1.msra.mxu0 %v330
    %332 = vmatprep.subr.mxu0 0.0
    %v333 = vand.u32 %v71, 4294901760
    %v334 = vsub.f32 %v71, %v333
    %335 = vmatpush1.msra.mxu0 %v334
    %336 = vmatprep.subr.mxu0 0.0
    %v337 = vand.u32 %v72, 4294901760
    %v338 = vsub.f32 %v72, %v337
    %339 = vmatpush1.msra.mxu0 %v338
    %340 = vmatprep.subr.mxu0 0.0
    %v341 = vand.u32 %v73, 4294901760
    %v342 = vsub.f32 %v73, %v341
    %343 = vmatpush1.msra.mxu0 %v342
    %344 = vmatprep.subr.mxu0 0.0
    %v345 = vand.u32 %v74, 4294901760
    %v346 = vsub.f32 %v74, %v345
    %347 = vmatpush1.msra.mxu0 %v346
    %348 = vmatprep.subr.mxu0 0.0
    %v349 = vand.u32 %v75, 4294901760
    %v350 = vsub.f32 %v75, %v349
    %351 = vmatpush1.msra.mxu0 %v350
    %352 = vmatprep.subr.mxu0 0.0
    %v353 = vand.u32 %v76, 4294901760
    %v354 = vsub.f32 %v76, %v353
    %355 = vmatpush1.msra.mxu0 %v354
    %356 = vmatprep.subr.mxu0 0.0
    %v357 = vand.u32 %v77, 4294901760
    %v358 = vsub.f32 %v77, %v357
    %359 = vmatpush1.msra.mxu0 %v358
    %360 = vmatprep.subr.mxu0 0.0
    %v361 = vand.u32 %v78, 4294901760
    %v362 = vsub.f32 %v78, %v361
    %363 = vmatpush1.msra.mxu0 %v362
    %364 = vmatprep.subr.mxu0 0.0
    %v365 = vand.u32 %v79, 4294901760
    %v366 = vsub.f32 %v79, %v365
    %367 = vmatpush1.msra.mxu0 %v366
    %368 = vmatprep.subr.mxu0 0.0
    %v369 = vand.u32 %v80, 4294901760
    %v370 = vsub.f32 %v80, %v369
    %371 = vmatpush1.msra.mxu0 %v370
    %372 = vmatprep.subr.mxu0 0.0
    %v373 = vand.u32 %v81, 4294901760
    %v374 = vsub.f32 %v81, %v373
    %375 = vmatpush1.msra.mxu0 %v374
    %376 = vmatprep.subr.mxu0 0.0
    %v377 = vand.u32 %v82, 4294901760
    %v378 = vsub.f32 %v82, %v377
    %379 = vmatpush1.msra.mxu0 %v378
    %380 = vmatprep.subr.mxu0 0.0
    %v381 = vand.u32 %v83, 4294901760
    %v382 = vsub.f32 %v83, %v381
    %383 = vmatpush1.msra.mxu0 %v382
    %384 = vmatprep.subr.mxu0 0.0
    %v385 = vand.u32 %v84, 4294901760
    %v386 = vsub.f32 %v84, %v385
    %387 = vmatpush1.msra.mxu0 %v386
    %388 = vmatprep.subr.mxu0 0.0
    %v389 = vand.u32 %v85, 4294901760
    %v390 = vsub.f32 %v85, %v389
    %391 = vmatpush1.msra.mxu0 %v390
    %392 = vmatprep.subr.mxu0 0.0
    %393 = vmatpush1.msra.mxu0 0.0
    %394 = vmatprep.subr.mxu0 0.0
    %395 = vmatpush1.msra.mxu0 0.0
    %396 = vmatprep.subr.mxu0 0.0
    %397 = vmatpush1.msra.mxu0 0.0
    %398 = vmatprep.subr.mxu0 0.0
    %399 = vmatpush1.msra.mxu0 0.0
    %400 = vmatprep.subr.mxu0 0.0
    %401 = vmatpush1.msra.mxu0 0.0
    %402 = vmatprep.subr.mxu0 0.0
    %403 = vmatpush1.msra.mxu0 0.0
    %404 = vmatprep.subr.mxu0 0.0
    %405 = vmatpush1.msra.mxu0 0.0
    %406 = vmatprep.subr.mxu0 0.0
    %407 = vmatpush1.msra.mxu0 0.0
    %408 = vmatprep.subr.mxu0 0.0
    %409 = vmatpush1.msra.mxu0 0.0
    %410 = vmatprep.subr.mxu0 0.0
    %411 = vmatpush1.msra.mxu0 0.0
    %412 = vmatprep.subr.mxu0 0.0
    %413 = vmatpush1.msra.mxu0 0.0
    %414 = vmatprep.subr.mxu0 0.0
    %415 = vmatpush1.msra.mxu0 0.0
    %416 = vmatprep.subr.mxu0 0.0
    %417 = vmatpush1.msra.mxu0 0.0
    %418 = vmatprep.subr.mxu0 0.0
    %419 = vmatpush1.msra.mxu0 0.0
    %420 = vmatprep.subr.mxu0 0.0
    %421 = vmatpush1.msra.mxu0 0.0
    %422 = vmatprep.subr.mxu0 0.0
    %423 = vmatpush1.msra.mxu0 0.0
    %424 = vmatprep.mubr.f32.mxu0 0.0
    %v425 = vand.u32 %v69, 4294901760
    %v426 = vsub.f32 %v69, %v425
    %427 = vmatmul.mubr.f32.gmra.mrb[0].mxu0 %v426
    %v428 = vpop.f32.mrb[0].mxu0
    %v429 = vadd.f32 %v325, %v428
    %v430 = vpop.f32.mrb[0].mxu0
    %431 = vdwg.mxu0
    %432 = vmatprep.subr.mxu0 0.0
    %v433 = vand.u32 %v70, 4294901760
    %434 = vmatpush1.msra.mxu0 %v433
    %435 = vmatprep.subr.mxu0 0.0
    %v436 = vand.u32 %v71, 4294901760
    %437 = vmatpush1.msra.mxu0 %v436
    %438 = vmatprep.subr.mxu0 0.0
    %v439 = vand.u32 %v72, 4294901760
    %440 = vmatpush1.msra.mxu0 %v439
    %441 = vmatprep.subr.mxu0 0.0
    %v442 = vand.u32 %v73, 4294901760
    %443 = vmatpush1.msra.mxu0 %v442
    %444 = vmatprep.subr.mxu0 0.0
    %v445 = vand.u32 %v74, 4294901760
    %446 = vmatpush1.msra.mxu0 %v445
    %447 = vmatprep.subr.mxu0 0.0
    %v448 = vand.u32 %v75, 4294901760
    %449 = vmatpush1.msra.mxu0 %v448
    %450 = vmatprep.subr.mxu0 0.0
    %v451 = vand.u32 %v76, 4294901760
    %452 = vmatpush1.msra.mxu0 %v451
    %453 = vmatprep.subr.mxu0 0.0
    %v454 = vand.u32 %v77, 4294901760
    %455 = vmatpush1.msra.mxu0 %v454
    %456 = vmatprep.subr.mxu0 0.0
    %v457 = vand.u32 %v78, 4294901760
    %458 = vmatpush1.msra.mxu0 %v457
    %459 = vmatprep.subr.mxu0 0.0
    %v460 = vand.u32 %v79, 4294901760
    %461 = vmatpush1.msra.mxu0 %v460
    %462 = vmatprep.subr.mxu0 0.0
    %v463 = vand.u32 %v80, 4294901760
    %464 = vmatpush1.msra.mxu0 %v463
    %465 = vmatprep.subr.mxu0 0.0
    %v466 = vand.u32 %v81, 4294901760
    %467 = vmatpush1.msra.mxu0 %v466
    %468 = vmatprep.subr.mxu0 0.0
    %v469 = vand.u32 %v82, 4294901760
    %470 = vmatpush1.msra.mxu0 %v469
    %471 = vmatprep.subr.mxu0 0.0
    %v472 = vand.u32 %v83, 4294901760
    %473 = vmatpush1.msra.mxu0 %v472
    %474 = vmatprep.subr.mxu0 0.0
    %v475 = vand.u32 %v84, 4294901760
    %476 = vmatpush1.msra.mxu0 %v475
    %477 = vmatprep.subr.mxu0 0.0
    %v478 = vand.u32 %v85, 4294901760
    %479 = vmatpush1.msra.mxu0 %v478
    %480 = vmatprep.subr.mxu0 0.0
    %481 = vmatpush1.msra.mxu0 0.0
    %482 = vmatprep.subr.mxu0 0.0
    %483 = vmatpush1.msra.mxu0 0.0
    %484 = vmatprep.subr.mxu0 0.0
    %485 = vmatpush1.msra.mxu0 0.0
    %486 = vmatprep.subr.mxu0 0.0
    %487 = vmatpush1.msra.mxu0 0.0
    %488 = vmatprep.subr.mxu0 0.0
    %489 = vmatpush1.msra.mxu0 0.0
    %490 = vmatprep.subr.mxu0 0.0
    %491 = vmatpush1.msra.mxu0 0.0
    %492 = vmatprep.subr.mxu0 0.0
    %493 = vmatpush1.msra.mxu0 0.0
    %494 = vmatprep.subr.mxu0 0.0
    %495 = vmatpush1.msra.mxu0 0.0
    %496 = vmatprep.subr.mxu0 0.0
    %497 = vmatpush1.msra.mxu0 0.0
    %498 = vmatprep.subr.mxu0 0.0
    %499 = vmatpush1.msra.mxu0 0.0
    %500 = vmatprep.subr.mxu0 0.0
    %501 = vmatpush1.msra.mxu0 0.0
    %502 = vmatprep.subr.mxu0 0.0
    %503 = vmatpush1.msra.mxu0 0.0
    %504 = vmatprep.subr.mxu0 0.0
    %505 = vmatpush1.msra.mxu0 0.0
    %506 = vmatprep.subr.mxu0 0.0
    %507 = vmatpush1.msra.mxu0 0.0
    %508 = vmatprep.subr.mxu0 0.0
    %509 = vmatpush1.msra.mxu0 0.0
    %510 = vmatprep.subr.mxu0 0.0
    %511 = vmatpush1.msra.mxu0 0.0
    %512 = vmatprep.mubr.f32.mxu0 0.0
    %v513 = vand.u32 %v69, 4294901760
    %v514 = vsub.f32 %v69, %v513
    %v515 = vand.u32 %v514, 4294901760
    %516 = vmatmul.mubr.f32.gmra.mrb[0].mxu0 %v515
    %v517 = vpop.f32.mrb[0].mxu0
    %v518 = vadd.f32 %v429, %v517
    %v519 = vpop.f32.mrb[0].mxu0
    %520 = vdwg.mxu0
    %521 = vmatprep.subr.mxu0 0.0
    %v522 = vand.u32 %v70, 4294901760
    %v523 = vsub.f32 %v70, %v522
    %v524 = vand.u32 %v523, 4294901760
    %525 = vmatpush1.msra.mxu0 %v524
    %526 = vmatprep.subr.mxu0 0.0
    %v527 = vand.u32 %v71, 4294901760
    %v528 = vsub.f32 %v71, %v527
    %v529 = vand.u32 %v528, 4294901760
    %530 = vmatpush1.msra.mxu0 %v529
    %531 = vmatprep.subr.mxu0 0.0
    %v532 = vand.u32 %v72, 4294901760
    %v533 = vsub.f32 %v72, %v532
    %v534 = vand.u32 %v533, 4294901760
    %535 = vmatpush1.msra.mxu0 %v534
    %536 = vmatprep.subr.mxu0 0.0
    %v537 = vand.u32 %v73, 4294901760
    %v538 = vsub.f32 %v73, %v537
    %v539 = vand.u32 %v538, 4294901760
    %540 = vmatpush1.msra.mxu0 %v539
    %541 = vmatprep.subr.mxu0 0.0
    %v542 = vand.u32 %v74, 4294901760
    %v543 = vsub.f32 %v74, %v542
    %v544 = vand.u32 %v543, 4294901760
    %545 = vmatpush1.msra.mxu0 %v544
    %546 = vmatprep.subr.mxu0 0.0
    %v547 = vand.u32 %v75, 4294901760
    %v548 = vsub.f32 %v75, %v547
    %v549 = vand.u32 %v548, 4294901760
    %550 = vmatpush1.msra.mxu0 %v549
    %551 = vmatprep.subr.mxu0 0.0
    %v552 = vand.u32 %v76, 4294901760
    %v553 = vsub.f32 %v76, %v552
    %v554 = vand.u32 %v553, 4294901760
    %555 = vmatpush1.msra.mxu0 %v554
    %556 = vmatprep.subr.mxu0 0.0
    %v557 = vand.u32 %v77, 4294901760
    %v558 = vsub.f32 %v77, %v557
    %v559 = vand.u32 %v558, 4294901760
    %560 = vmatpush1.msra.mxu0 %v559
    %561 = vmatprep.subr.mxu0 0.0
    %v562 = vand.u32 %v78, 4294901760
    %v563 = vsub.f32 %v78, %v562
    %v564 = vand.u32 %v563, 4294901760
    %565 = vmatpush1.msra.mxu0 %v564
    %566 = vmatprep.subr.mxu0 0.0
    %v567 = vand.u32 %v79, 4294901760
    %v568 = vsub.f32 %v79, %v567
    %v569 = vand.u32 %v568, 4294901760
    %570 = vmatpush1.msra.mxu0 %v569
    %571 = vmatprep.subr.mxu0 0.0
    %v572 = vand.u32 %v80, 4294901760
    %v573 = vsub.f32 %v80, %v572
    %v574 = vand.u32 %v573, 4294901760
    %575 = vmatpush1.msra.mxu0 %v574
    %576 = vmatprep.subr.mxu0 0.0
    %v577 = vand.u32 %v81, 4294901760
    %v578 = vsub.f32 %v81, %v577
    %v579 = vand.u32 %v578, 4294901760
    %580 = vmatpush1.msra.mxu0 %v579
    %581 = vmatprep.subr.mxu0 0.0
    %v582 = vand.u32 %v82, 4294901760
    %v583 = vsub.f32 %v82, %v582
    %v584 = vand.u32 %v583, 4294901760
    %585 = vmatpush1.msra.mxu0 %v584
    %586 = vmatprep.subr.mxu0 0.0
    %v587 = vand.u32 %v83, 4294901760
    %v588 = vsub.f32 %v83, %v587
    %v589 = vand.u32 %v588, 4294901760
    %590 = vmatpush1.msra.mxu0 %v589
    %591 = vmatprep.subr.mxu0 0.0
    %v592 = vand.u32 %v84, 4294901760
    %v593 = vsub.f32 %v84, %v592
    %v594 = vand.u32 %v593, 4294901760
    %595 = vmatpush1.msra.mxu0 %v594
    %596 = vmatprep.subr.mxu0 0.0
    %v597 = vand.u32 %v85, 4294901760
    %v598 = vsub.f32 %v85, %v597
    %v599 = vand.u32 %v598, 4294901760
    %600 = vmatpush1.msra.mxu0 %v599
    %601 = vmatprep.subr.mxu0 0.0
    %602 = vmatpush1.msra.mxu0 0.0
    %603 = vmatprep.subr.mxu0 0.0
    %604 = vmatpush1.msra.mxu0 0.0
    %605 = vmatprep.subr.mxu0 0.0
    %606 = vmatpush1.msra.mxu0 0.0
    %607 = vmatprep.subr.mxu0 0.0
    %608 = vmatpush1.msra.mxu0 0.0
    %609 = vmatprep.subr.mxu0 0.0
    %610 = vmatpush1.msra.mxu0 0.0
    %611 = vmatprep.subr.mxu0 0.0
    %612 = vmatpush1.msra.mxu0 0.0
    %613 = vmatprep.subr.mxu0 0.0
    %614 = vmatpush1.msra.mxu0 0.0
    %615 = vmatprep.subr.mxu0 0.0
    %616 = vmatpush1.msra.mxu0 0.0
    %617 = vmatprep.subr.mxu0 0.0
    %618 = vmatpush1.msra.mxu0 0.0
    %619 = vmatprep.subr.mxu0 0.0
    %620 = vmatpush1.msra.mxu0 0.0
    %621 = vmatprep.subr.mxu0 0.0
    %622 = vmatpush1.msra.mxu0 0.0
    %623 = vmatprep.subr.mxu0 0.0
    %624 = vmatpush1.msra.mxu0 0.0
    %625 = vmatprep.subr.mxu0 0.0
    %626 = vmatpush1.msra.mxu0 0.0
    %627 = vmatprep.subr.mxu0 0.0
    %628 = vmatpush1.msra.mxu0 0.0
    %629 = vmatprep.subr.mxu0 0.0
    %630 = vmatpush1.msra.mxu0 0.0
    %631 = vmatprep.subr.mxu0 0.0
    %632 = vmatpush1.msra.mxu0 0.0
    %633 = vmatprep.mubr.f32.mxu0 0.0
    %v634 = vand.u32 %v69, 4294901760
    %635 = vmatmul.mubr.f32.gmra.mrb[0].mxu0 %v634
    %v636 = vpop.f32.mrb[0].mxu0
    %v637 = vadd.f32 %v518, %v636
    %v638 = vpop.f32.mrb[0].mxu0
    %639 = vdwg.mxu0
    %640 = vmatprep.subr.mxu0 0.0
    %v641 = vand.u32 %v70, 4294901760
    %642 = vmatpush1.msra.mxu0 %v641
    %643 = vmatprep.subr.mxu0 0.0
    %v644 = vand.u32 %v71, 4294901760
    %645 = vmatpush1.msra.mxu0 %v644
    %646 = vmatprep.subr.mxu0 0.0
    %v647 = vand.u32 %v72, 4294901760
    %648 = vmatpush1.msra.mxu0 %v647
    %649 = vmatprep.subr.mxu0 0.0
    %v650 = vand.u32 %v73, 4294901760
    %651 = vmatpush1.msra.mxu0 %v650
    %652 = vmatprep.subr.mxu0 0.0
    %v653 = vand.u32 %v74, 4294901760
    %654 = vmatpush1.msra.mxu0 %v653
    %655 = vmatprep.subr.mxu0 0.0
    %v656 = vand.u32 %v75, 4294901760
    %657 = vmatpush1.msra.mxu0 %v656
    %658 = vmatprep.subr.mxu0 0.0
    %v659 = vand.u32 %v76, 4294901760
    %660 = vmatpush1.msra.mxu0 %v659
    %661 = vmatprep.subr.mxu0 0.0
    %v662 = vand.u32 %v77, 4294901760
    %663 = vmatpush1.msra.mxu0 %v662
    %664 = vmatprep.subr.mxu0 0.0
    %v665 = vand.u32 %v78, 4294901760
    %666 = vmatpush1.msra.mxu0 %v665
    %667 = vmatprep.subr.mxu0 0.0
    %v668 = vand.u32 %v79, 4294901760
    %669 = vmatpush1.msra.mxu0 %v668
    %670 = vmatprep.subr.mxu0 0.0
    %v671 = vand.u32 %v80, 4294901760
    %672 = vmatpush1.msra.mxu0 %v671
    %673 = vmatprep.subr.mxu0 0.0
    %v674 = vand.u32 %v81, 4294901760
    %675 = vmatpush1.msra.mxu0 %v674
    %676 = vmatprep.subr.mxu0 0.0
    %v677 = vand.u32 %v82, 4294901760
    %678 = vmatpush1.msra.mxu0 %v677
    %679 = vmatprep.subr.mxu0 0.0
    %v680 = vand.u32 %v83, 4294901760
    %681 = vmatpush1.msra.mxu0 %v680
    %682 = vmatprep.subr.mxu0 0.0
    %v683 = vand.u32 %v84, 4294901760
    %684 = vmatpush1.msra.mxu0 %v683
    %685 = vmatprep.subr.mxu0 0.0
    %v686 = vand.u32 %v85, 4294901760
    %687 = vmatpush1.msra.mxu0 %v686
    %688 = vmatprep.subr.mxu0 0.0
    %689 = vmatpush1.msra.mxu0 0.0
    %690 = vmatprep.subr.mxu0 0.0
    %691 = vmatpush1.msra.mxu0 0.0
    %692 = vmatprep.subr.mxu0 0.0
    %693 = vmatpush1.msra.mxu0 0.0
    %694 = vmatprep.subr.mxu0 0.0
    %695 = vmatpush1.msra.mxu0 0.0
    %696 = vmatprep.subr.mxu0 0.0
    %697 = vmatpush1.msra.mxu0 0.0
    %698 = vmatprep.subr.mxu0 0.0
    %699 = vmatpush1.msra.mxu0 0.0
    %700 = vmatprep.subr.mxu0 0.0
    %701 = vmatpush1.msra.mxu0 0.0
    %702 = vmatprep.subr.mxu0 0.0
    %703 = vmatpush1.msra.mxu0 0.0
    %704 = vmatprep.subr.mxu0 0.0
    %705 = vmatpush1.msra.mxu0 0.0
    %706 = vmatprep.subr.mxu0 0.0
    %707 = vmatpush1.msra.mxu0 0.0
    %708 = vmatprep.subr.mxu0 0.0
    %709 = vmatpush1.msra.mxu0 0.0
    %710 = vmatprep.subr.mxu0 0.0
    %711 = vmatpush1.msra.mxu0 0.0
    %712 = vmatprep.subr.mxu0 0.0
    %713 = vmatpush1.msra.mxu0 0.0
    %714 = vmatprep.subr.mxu0 0.0
    %715 = vmatpush1.msra.mxu0 0.0
    %716 = vmatprep.subr.mxu0 0.0
    %717 = vmatpush1.msra.mxu0 0.0
    %718 = vmatprep.subr.mxu0 0.0
    %719 = vmatpush1.msra.mxu0 0.0
    %720 = vmatprep.mubr.f32.mxu0 0.0
    %v721 = vand.u32 %v69, 4294901760
    %722 = vmatmul.mubr.f32.gmra.mrb[0].mxu0 %v721
    %v723 = vpop.f32.mrb[0].mxu0
    %v724 = vadd.f32 %v637, %v723
    %v725 = vpop.f32.mrb[0].mxu0
    %726 = vdwg.mxu0
    %vm727 = vcmp.gt.f32.partialorder %v724, 20.0
    %v728 = vmin.f32 %v724, 20.0
    %v729 = vmul.f32 %v728, 1.442695
    %v730 = vpow.pop %v729
    %v731 = vadd.f32 %v730, 1.0
    %v732 = vlog2.pop %v731
    %v733 = vmul.f32 %v732, 0.6931472
    %v734 = vmul.f32 -0.5, %v730
    %v735 = vadd.f32 %v734, 1.0
    %v736 = vmul.f32 %v735, %v730
    %v737 = vand.u32 2147483647, %v730
    %vm738 = vcmp.lt.f32.partialorder %v737, 0.0004427343
    %v739 = vsel %vm738, %v736, %v733
    %v740 = vsel %vm727, %v724, %v739
    %v741 = vld [vmem:[#allocation5] sm:$0xff]
    %v742 = vlaneseq
    %v743 = vand.u32 %v742, 127
    %744 = vset.pattern.permute.xlu0 0
    %745 = vperm.xlu0 %744, %v741
    %v746 = vpop.permute.xlu0 %745
    %vm747 = vcmp.eq.s32.totalorder %v746, %v743
    %vm748 = vcmp.ne.s32.totalorder %v741, 0
    %v749 = vsel %vm748, 1, 0
    %750 = vset.pattern.permute.xlu0 0
    %751 = vperm.xlu0 %750, %v749
    %v752 = vpop.permute.xlu0 %751
    %vm753 = vcmp.eq.s32.totalorder %v752, 1
    %vm754 = vmand %vm747, %vm753
    %v755 = vsel %vm754, 1, 0
    %v756 = vcvt.s32.f32 %v755
    %v757 = vadd.f32 %v756, 0.0
    %758 = vset.pattern.permute.xlu0 1
    %759 = vperm.xlu0 %758, %v741
    %v760 = vpop.permute.xlu0 %759
    %vm761 = vcmp.eq.s32.totalorder %v760, %v743
    %762 = vset.pattern.permute.xlu0 1
    %763 = vperm.xlu0 %762, %v749
    %v764 = vpop.permute.xlu0 %763
    %vm765 = vcmp.eq.s32.totalorder %v764, 1
    %vm766 = vmand %vm761, %vm765
    %v767 = vsel %vm766, 1, 0
    %v768 = vcvt.s32.f32 %v767
    %v769 = vadd.f32 %v757, %v768
    %770 = vset.pattern.permute.xlu0 2
    %771 = vperm.xlu0 %770, %v741
    %v772 = vpop.permute.xlu0 %771
    %vm773 = vcmp.eq.s32.totalorder %v772, %v743
    %774 = vset.pattern.permute.xlu0 2
    %775 = vperm.xlu0 %774, %v749
    %v776 = vpop.permute.xlu0 %775
    %vm777 = vcmp.eq.s32.totalorder %v776, 1
    %vm778 = vmand %vm773, %vm777
    %v779 = vsel %vm778, 1, 0
    %v780 = vcvt.s32.f32 %v779
    %v781 = vadd.f32 %v769, %v780
    %782 = vset.pattern.permute.xlu0 3
    %783 = vperm.xlu0 %782, %v741
    %v784 = vpop.permute.xlu0 %783
    %vm785 = vcmp.eq.s32.totalorder %v784, %v743
    %786 = vset.pattern.permute.xlu0 3
    %787 = vperm.xlu0 %786, %v749
    %v788 = vpop.permute.xlu0 %787
    %vm789 = vcmp.eq.s32.totalorder %v788, 1
    %vm790 = vmand %vm785, %vm789
    %v791 = vsel %vm790, 1, 0
    %v792 = vcvt.s32.f32 %v791
    %v793 = vadd.f32 %v781, %v792
    %794 = vset.pattern.permute.xlu0 4
    %795 = vperm.xlu0 %794, %v741
    %v796 = vpop.permute.xlu0 %795
    %vm797 = vcmp.eq.s32.totalorder %v796, %v743
    %798 = vset.pattern.permute.xlu0 4
    %799 = vperm.xlu0 %798, %v749
    %v800 = vpop.permute.xlu0 %799
    %vm801 = vcmp.eq.s32.totalorder %v800, 1
    %vm802 = vmand %vm797, %vm801
    %v803 = vsel %vm802, 1, 0
    %v804 = vcvt.s32.f32 %v803
    %v805 = vadd.f32 %v793, %v804
    %806 = vset.pattern.permute.xlu0 5
    %807 = vperm.xlu0 %806, %v741
    %v808 = vpop.permute.xlu0 %807
    %vm809 = vcmp.eq.s32.totalorder %v808, %v743
    %810 = vset.pattern.permute.xlu0 5
    %811 = vperm.xlu0 %810, %v749
    %v812 = vpop.permute.xlu0 %811
    %vm813 = vcmp.eq.s32.totalorder %v812, 1
    %vm814 = vmand %vm809, %vm813
    %v815 = vsel %vm814, 1, 0
    %v816 = vcvt.s32.f32 %v815
    %v817 = vadd.f32 %v805, %v816
    %818 = vset.pattern.permute.xlu0 6
    %819 = vperm.xlu0 %818, %v741
    %v820 = vpop.permute.xlu0 %819
    %vm821 = vcmp.eq.s32.totalorder %v820, %v743
    %822 = vset.pattern.permute.xlu0 6
    %823 = vperm.xlu0 %822, %v749
    %v824 = vpop.permute.xlu0 %823
    %vm825 = vcmp.eq.s32.totalorder %v824, 1
    %vm826 = vmand %vm821, %vm825
    %v827 = vsel %vm826, 1, 0
    %v828 = vcvt.s32.f32 %v827
    %v829 = vadd.f32 %v817, %v828
    %830 = vset.pattern.permute.xlu0 7
    %831 = vperm.xlu0 %830, %v741
    %v832 = vpop.permute.xlu0 %831
    %vm833 = vcmp.eq.s32.totalorder %v832, %v743
    %834 = vset.pattern.permute.xlu0 7
    %835 = vperm.xlu0 %834, %v749
    %v836 = vpop.permute.xlu0 %835
    %vm837 = vcmp.eq.s32.totalorder %v836, 1
    %vm838 = vmand %vm833, %vm837
    %v839 = vsel %vm838, 1, 0
    %v840 = vcvt.s32.f32 %v839
    %v841 = vadd.f32 %v829, %v840
    %vm842 = vcmp.eq.s32.totalorder %v743, 0
    %v843 = vsel %vm842, 1.0, %v841
    %v844 = vld [vmem:[#allocation8] sm:$0xff]
    %v845 = vld [vmem:[#allocation8 + $0x8] sm:$0xff]
    %v846 = vld [vmem:[#allocation8 + $0x10] sm:$0xff]
    %v847 = vld [vmem:[#allocation8 + $0x18] sm:$0xff]
    %v848 = vld [vmem:[#allocation8 + $0x20] sm:$0xff]
    %v849 = vld [vmem:[#allocation8 + $0x28] sm:$0xff]
    %v850 = vld [vmem:[#allocation8 + $0x30] sm:$0xff]
    %v851 = vld [vmem:[#allocation8 + $0x38] sm:$0xff]
    %v852 = vld [vmem:[#allocation8 + $0x40] sm:$0xff]
    %v853 = vld [vmem:[#allocation8 + $0x48] sm:$0xff]
    %v854 = vld [vmem:[#allocation8 + $0x50] sm:$0xff]
    %v855 = vld [vmem:[#allocation8 + $0x58] sm:$0xff]
    %v856 = vld [vmem:[#allocation8 + $0x60] sm:$0xff]
    %v857 = vld [vmem:[#allocation8 + $0x68] sm:$0xff]
    %v858 = vld [vmem:[#allocation8 + $0x70] sm:$0xff]
    %v859 = vld [vmem:[#allocation8 + $0x78] sm:$0xff]
    %v860 = vld [vmem:[#allocation8 + $0x80] sm:$0xff]
    %v861 = vld [vmem:[#allocation8 + $0x88] sm:$0xff]
    %v862 = vld [vmem:[#allocation8 + $0x90] sm:$0xff]
    %v863 = vld [vmem:[#allocation8 + $0x98] sm:$0xff]
    %v864 = vld [vmem:[#allocation8 + $0xa0] sm:$0xff]
    %v865 = vld [vmem:[#allocation8 + $0xa8] sm:$0xff]
    %v866 = vld [vmem:[#allocation8 + $0xb0] sm:$0xff]
    %v867 = vld [vmem:[#allocation8 + $0xb8] sm:$0xff]
    %v868 = vld [vmem:[#allocation8 + $0xc0] sm:$0xff]
    %v869 = vld [vmem:[#allocation8 + $0xc8] sm:$0xff]
    %v870 = vld [vmem:[#allocation8 + $0xd0] sm:$0xff]
    %v871 = vld [vmem:[#allocation8 + $0xd8] sm:$0xff]
    %v872 = vld [vmem:[#allocation8 + $0xe0] sm:$0xff]
    %v873 = vld [vmem:[#allocation8 + $0xe8] sm:$0xff]
    %v874 = vld [vmem:[#allocation8 + $0xf0] sm:$0xff]
    %v875 = vld [vmem:[#allocation8 + $0xf8] sm:$0xff]
    %876 = vmatprep.subr.mxu0 0.0
    %v877 = vand.u32 %v860, 4294901760
    %878 = vmatpush1.msra.mxu0 %v877
    %879 = vmatprep.subr.mxu0 0.0
    %v880 = vand.u32 %v861, 4294901760
    %881 = vmatpush1.msra.mxu0 %v880
    %882 = vmatprep.subr.mxu0 0.0
    %v883 = vand.u32 %v862, 4294901760
    %884 = vmatpush1.msra.mxu0 %v883
    %885 = vmatprep.subr.mxu0 0.0
    %v886 = vand.u32 %v863, 4294901760
    %887 = vmatpush1.msra.mxu0 %v886
    %888 = vmatprep.subr.mxu0 0.0
    %v889 = vand.u32 %v864, 4294901760
    %890 = vmatpush1.msra.mxu0 %v889
    %891 = vmatprep.subr.mxu0 0.0
    %v892 = vand.u32 %v865, 4294901760
    %893 = vmatpush1.msra.mxu0 %v892
    %894 = vmatprep.subr.mxu0 0.0
    %v895 = vand.u32 %v866, 4294901760
    %896 = vmatpush1.msra.mxu0 %v895
    %897 = vmatprep.subr.mxu0 0.0
    %v898 = vand.u32 %v867, 4294901760
    %899 = vmatpush1.msra.mxu0 %v898
    %900 = vmatprep.subr.mxu0 0.0
    %v901 = vand.u32 %v868, 4294901760
    %902 = vmatpush1.msra.mxu0 %v901
    %903 = vmatprep.subr.mxu0 0.0
    %v904 = vand.u32 %v869, 4294901760
    %905 = vmatpush1.msra.mxu0 %v904
    %906 = vmatprep.subr.mxu0 0.0
    %v907 = vand.u32 %v870, 4294901760
    %908 = vmatpush1.msra.mxu0 %v907
    %909 = vmatprep.subr.mxu0 0.0
    %v910 = vand.u32 %v871, 4294901760
    %911 = vmatpush1.msra.mxu0 %v910
    %912 = vmatprep.subr.mxu0 0.0
    %v913 = vand.u32 %v872, 4294901760
    %914 = vmatpush1.msra.mxu0 %v913
    %915 = vmatprep.subr.mxu0 0.0
    %v916 = vand.u32 %v873, 4294901760
    %917 = vmatpush1.msra.mxu0 %v916
    %918 = vmatprep.subr.mxu0 0.0
    %v919 = vand.u32 %v874, 4294901760
    %920 = vmatpush1.msra.mxu0 %v919
    %921 = vmatprep.subr.mxu0 0.0
    %v922 = vand.u32 %v875, 4294901760
    %923 = vmatpush1.msra.mxu0 %v922
    %924 = vmatprep.subr.mxu0 0.0
    %925 = vmatpush1.msra.mxu0 0.0
    %926 = vmatprep.subr.mxu0 0.0
    %927 = vmatpush1.msra.mxu0 0.0
    %928 = vmatprep.subr.mxu0 0.0
    %929 = vmatpush1.msra.mxu0 0.0
    %930 = vmatprep.subr.mxu0 0.0
    %931 = vmatpush1.msra.mxu0 0.0
    %932 = vmatprep.subr.mxu0 0.0
    %933 = vmatpush1.msra.mxu0 0.0
    %934 = vmatprep.subr.mxu0 0.0
    %935 = vmatpush1.msra.mxu0 0.0
    %936 = vmatprep.subr.mxu0 0.0
    %937 = vmatpush1.msra.mxu0 0.0
    %938 = vmatprep.subr.mxu0 0.0
    %939 = vmatpush1.msra.mxu0 0.0
    %940 = vmatprep.subr.mxu0 0.0
    %941 = vmatpush1.msra.mxu0 0.0
    %942 = vmatprep.subr.mxu0 0.0
    %943 = vmatpush1.msra.mxu0 0.0
    %944 = vmatprep.subr.mxu0 0.0
    %945 = vmatpush1.msra.mxu0 0.0
    %946 = vmatprep.subr.mxu0 0.0
    %947 = vmatpush1.msra.mxu0 0.0
    %948 = vmatprep.subr.mxu0 0.0
    %949 = vmatpush1.msra.mxu0 0.0
    %950 = vmatprep.subr.mxu0 0.0
    %951 = vmatpush1.msra.mxu0 0.0
    %952 = vmatprep.subr.mxu0 0.0
    %953 = vmatpush1.msra.mxu0 0.0
    %954 = vmatprep.subr.mxu0 0.0
    %955 = vmatpush1.msra.mxu0 0.0
    %956 = vmatprep.mubr.f32.mxu0 0.0
    %v957 = vand.u32 %v843, 4294901760
    %v958 = vsub.f32 %v843, %v957
    %v959 = vand.u32 %v958, 4294901760
    %v960 = vsub.f32 %v958, %v959
    %v961 = vand.u32 %v960, 4294901760
    %962 = vmatmul.mubr.f32.gmra.mrb[0].mxu0 %v961
    %v963 = vpop.f32.mrb[0].mxu0
    %v964 = vadd.f32 0.0, %v963
    %v965 = vpop.f32.mrb[0].mxu0
    %966 = vdwg.mxu0
    %967 = vmatprep.subr.mxu0 0.0
    %v968 = vand.u32 %v860, 4294901760
    %v969 = vsub.f32 %v860, %v968
    %v970 = vand.u32 %v969, 4294901760
    %v971 = vsub.f32 %v969, %v970
    %v972 = vand.u32 %v971, 4294901760
    %973 = vmatpush1.msra.mxu0 %v972
    %974 = vmatprep.subr.mxu0 0.0
    %v975 = vand.u32 %v861, 4294901760
    %v976 = vsub.f32 %v861, %v975
    %v977 = vand.u32 %v976, 4294901760
    %v978 = vsub.f32 %v976, %v977
    %v979 = vand.u32 %v978, 4294901760
    %980 = vmatpush1.msra.mxu0 %v979
    %981 = vmatprep.subr.mxu0 0.0
    %v982 = vand.u32 %v862, 4294901760
    %v983 = vsub.f32 %v862, %v982
    %v984 = vand.u32 %v983, 4294901760
    %v985 = vsub.f32 %v983, %v984
    %v986 = vand.u32 %v985, 4294901760
    %987 = vmatpush1.msra.mxu0 %v986
    %988 = vmatprep.subr.mxu0 0.0
    %v989 = vand.u32 %v863, 4294901760
    %v990 = vsub.f32 %v863, %v989
    %v991 = vand.u32 %v990, 4294901760
    %v992 = vsub.f32 %v990, %v991
    %v993 = vand.u32 %v992, 4294901760
    %994 = vmatpush1.msra.mxu0 %v993
    %995 = vmatprep.subr.mxu0 0.0
    %v996 = vand.u32 %v864, 4294901760
    %v997 = vsub.f32 %v864, %v996
    %v998 = vand.u32 %v997, 4294901760
    %v999 = vsub.f32 %v997, %v998
    %v1000 = vand.u32 %v999, 4294901760
    %1001 = vmatpush1.msra.mxu0 %v1000
    %1002 = vmatprep.subr.mxu0 0.0
    %v1003 = vand.u32 %v865, 4294901760
    %v1004 = vsub.f32 %v865, %v1003
    %v1005 = vand.u32 %v1004, 4294901760
    %v1006 = vsub.f32 %v1004, %v1005
    %v1007 = vand.u32 %v1006, 4294901760
    %1008 = vmatpush1.msra.mxu0 %v1007
    %1009 = vmatprep.subr.mxu0 0.0
    %v1010 = vand.u32 %v866, 4294901760
    %v1011 = vsub.f32 %v866, %v1010
    %v1012 = vand.u32 %v1011, 4294901760
    %v1013 = vsub.f32 %v1011, %v1012
    %v1014 = vand.u32 %v1013, 4294901760
    %1015 = vmatpush1.msra.mxu0 %v1014
    %1016 = vmatprep.subr.mxu0 0.0
    %v1017 = vand.u32 %v867, 4294901760
    %v1018 = vsub.f32 %v867, %v1017
    %v1019 = vand.u32 %v1018, 4294901760
    %v1020 = vsub.f32 %v1018, %v1019
    %v1021 = vand.u32 %v1020, 4294901760
    %1022 = vmatpush1.msra.mxu0 %v1021
    %1023 = vmatprep.subr.mxu0 0.0
    %v1024 = vand.u32 %v868, 4294901760
    %v1025 = vsub.f32 %v868, %v1024
    %v1026 = vand.u32 %v1025, 4294901760
    %v1027 = vsub.f32 %v1025, %v1026
    %v1028 = vand.u32 %v1027, 4294901760
    %1029 = vmatpush1.msra.mxu0 %v1028
    %1030 = vmatprep.subr.mxu0 0.0
    %v1031 = vand.u32 %v869, 4294901760
    %v1032 = vsub.f32 %v869, %v1031
    %v1033 = vand.u32 %v1032, 4294901760
    %v1034 = vsub.f32 %v1032, %v1033
    %v1035 = vand.u32 %v1034, 4294901760
    %1036 = vmatpush1.msra.mxu0 %v1035
    %1037 = vmatprep.subr.mxu0 0.0
    %v1038 = vand.u32 %v870, 4294901760
    %v1039 = vsub.f32 %v870, %v1038
    %v1040 = vand.u32 %v1039, 4294901760
    %v1041 = vsub.f32 %v1039, %v1040
    %v1042 = vand.u32 %v1041, 4294901760
    %1043 = vmatpush1.msra.mxu0 %v1042
    %1044 = vmatprep.subr.mxu0 0.0
    %v1045 = vand.u32 %v871, 4294901760
    %v1046 = vsub.f32 %v871, %v1045
    %v1047 = vand.u32 %v1046, 4294901760
    %v1048 = vsub.f32 %v1046, %v1047
    %v1049 = vand.u32 %v1048, 4294901760
    %1050 = vmatpush1.msra.mxu0 %v1049
    %1051 = vmatprep.subr.mxu0 0.0
    %v1052 = vand.u32 %v872, 4294901760
    %v1053 = vsub.f32 %v872, %v1052
    %v1054 = vand.u32 %v1053, 4294901760
    %v1055 = vsub.f32 %v1053, %v1054
    %v1056 = vand.u32 %v1055, 4294901760
    %1057 = vmatpush1.msra.mxu0 %v1056
    %1058 = vmatprep.subr.mxu0 0.0
    %v1059 = vand.u32 %v873, 4294901760
    %v1060 = vsub.f32 %v873, %v1059
    %v1061 = vand.u32 %v1060, 4294901760
    %v1062 = vsub.f32 %v1060, %v1061
    %v1063 = vand.u32 %v1062, 4294901760
    %1064 = vmatpush1.msra.mxu0 %v1063
    %1065 = vmatprep.subr.mxu0 0.0
    %v1066 = vand.u32 %v874, 4294901760
    %v1067 = vsub.f32 %v874, %v1066
    %v1068 = vand.u32 %v1067, 4294901760
    %v1069 = vsub.f32 %v1067, %v1068
    %v1070 = vand.u32 %v1069, 4294901760
    %1071 = vmatpush1.msra.mxu0 %v1070
    %1072 = vmatprep.subr.mxu0 0.0
    %v1073 = vand.u32 %v875, 4294901760
    %v1074 = vsub.f32 %v875, %v1073
    %v1075 = vand.u32 %v1074, 4294901760
    %v1076 = vsub.f32 %v1074, %v1075
    %v1077 = vand.u32 %v1076, 4294901760
    %1078 = vmatpush1.msra.mxu0 %v1077
    %1079 = vmatprep.subr.mxu0 0.0
    %1080 = vmatpush1.msra.mxu0 0.0
    %1081 = vmatprep.subr.mxu0 0.0
    %1082 = vmatpush1.msra.mxu0 0.0
    %1083 = vmatprep.subr.mxu0 0.0
    %1084 = vmatpush1.msra.mxu0 0.0
    %1085 = vmatprep.subr.mxu0 0.0
    %1086 = vmatpush1.msra.mxu0 0.0
    %1087 = vmatprep.subr.mxu0 0.0
    %1088 = vmatpush1.msra.mxu0 0.0
    %1089 = vmatprep.subr.mxu0 0.0
    %1090 = vmatpush1.msra.mxu0 0.0
    %1091 = vmatprep.subr.mxu0 0.0
    %1092 = vmatpush1.msra.mxu0 0.0
    %1093 = vmatprep.subr.mxu0 0.0
    %1094 = vmatpush1.msra.mxu0 0.0
    %1095 = vmatprep.subr.mxu0 0.0
    %1096 = vmatpush1.msra.mxu0 0.0
    %1097 = vmatprep.subr.mxu0 0.0
    %1098 = vmatpush1.msra.mxu0 0.0
    %1099 = vmatprep.subr.mxu0 0.0
    %1100 = vmatpush1.msra.mxu0 0.0
    %1101 = vmatprep.subr.mxu0 0.0
    %1102 = vmatpush1.msra.mxu0 0.0
    %1103 = vmatprep.subr.mxu0 0.0
    %1104 = vmatpush1.msra.mxu0 0.0
    %1105 = vmatprep.subr.mxu0 0.0
    %1106 = vmatpush1.msra.mxu0 0.0
    %1107 = vmatprep.subr.mxu0 0.0
    %1108 = vmatpush1.msra.mxu0 0.0
    %1109 = vmatprep.subr.mxu0 0.0
    %1110 = vmatpush1.msra.mxu0 0.0
    %1111 = vmatprep.mubr.f32.mxu0 0.0
    %v1112 = vand.u32 %v843, 4294901760
    %1113 = vmatmul.mubr.f32.gmra.mrb[0].mxu0 %v1112
    %v1114 = vpop.f32.mrb[0].mxu0
    %v1115 = vadd.f32 %v964, %v1114
    %v1116 = vpop.f32.mrb[0].mxu0
    %1117 = vdwg.mxu0
    %1118 = vmatprep.subr.mxu0 0.0
    %v1119 = vand.u32 %v860, 4294901760
    %v1120 = vsub.f32 %v860, %v1119
    %1121 = vmatpush1.msra.mxu0 %v1120
    %1122 = vmatprep.subr.mxu0 0.0
    %v1123 = vand.u32 %v861, 4294901760
    %v1124 = vsub.f32 %v861, %v1123
    %1125 = vmatpush1.msra.mxu0 %v1124
    %1126 = vmatprep.subr.mxu0 0.0
    %v1127 = vand.u32 %v862, 4294901760
    %v1128 = vsub.f32 %v862, %v1127
    %1129 = vmatpush1.msra.mxu0 %v1128
    %1130 = vmatprep.subr.mxu0 0.0
    %v1131 = vand.u32 %v863, 4294901760
    %v1132 = vsub.f32 %v863, %v1131
    %1133 = vmatpush1.msra.mxu0 %v1132
    %1134 = vmatprep.subr.mxu0 0.0
    %v1135 = vand.u32 %v864, 4294901760
    %v1136 = vsub.f32 %v864, %v1135
    %1137 = vmatpush1.msra.mxu0 %v1136
    %1138 = vmatprep.subr.mxu0 0.0
    %v1139 = vand.u32 %v865, 4294901760
    %v1140 = vsub.f32 %v865, %v1139
    %1141 = vmatpush1.msra.mxu0 %v1140
    %1142 = vmatprep.subr.mxu0 0.0
    %v1143 = vand.u32 %v866, 4294901760
    %v1144 = vsub.f32 %v866, %v1143
    %1145 = vmatpush1.msra.mxu0 %v1144
    %1146 = vmatprep.subr.mxu0 0.0
    %v1147 = vand.u32 %v867, 4294901760
    %v1148 = vsub.f32 %v867, %v1147
    %1149 = vmatpush1.msra.mxu0 %v1148
    %1150 = vmatprep.subr.mxu0 0.0
    %v1151 = vand.u32 %v868, 4294901760
    %v1152 = vsub.f32 %v868, %v1151
    %1153 = vmatpush1.msra.mxu0 %v1152
    %1154 = vmatprep.subr.mxu0 0.0
    %v1155 = vand.u32 %v869, 4294901760
    %v1156 = vsub.f32 %v869, %v1155
    %1157 = vmatpush1.msra.mxu0 %v1156
    %1158 = vmatprep.subr.mxu0 0.0
    %v1159 = vand.u32 %v870, 4294901760
    %v1160 = vsub.f32 %v870, %v1159
    %1161 = vmatpush1.msra.mxu0 %v1160
    %1162 = vmatprep.subr.mxu0 0.0
    %v1163 = vand.u32 %v871, 4294901760
    %v1164 = vsub.f32 %v871, %v1163
    %1165 = vmatpush1.msra.mxu0 %v1164
    %1166 = vmatprep.subr.mxu0 0.0
    %v1167 = vand.u32 %v872, 4294901760
    %v1168 = vsub.f32 %v872, %v1167
    %1169 = vmatpush1.msra.mxu0 %v1168
    %1170 = vmatprep.subr.mxu0 0.0
    %v1171 = vand.u32 %v873, 4294901760
    %v1172 = vsub.f32 %v873, %v1171
    %1173 = vmatpush1.msra.mxu0 %v1172
    %1174 = vmatprep.subr.mxu0 0.0
    %v1175 = vand.u32 %v874, 4294901760
    %v1176 = vsub.f32 %v874, %v1175
    %1177 = vmatpush1.msra.mxu0 %v1176
    %1178 = vmatprep.subr.mxu0 0.0
    %v1179 = vand.u32 %v875, 4294901760
    %v1180 = vsub.f32 %v875, %v1179
    %1181 = vmatpush1.msra.mxu0 %v1180
    %1182 = vmatprep.subr.mxu0 0.0
    %1183 = vmatpush1.msra.mxu0 0.0
    %1184 = vmatprep.subr.mxu0 0.0
    %1185 = vmatpush1.msra.mxu0 0.0
    %1186 = vmatprep.subr.mxu0 0.0
    %1187 = vmatpush1.msra.mxu0 0.0
    %1188 = vmatprep.subr.mxu0 0.0
    %1189 = vmatpush1.msra.mxu0 0.0
    %1190 = vmatprep.subr.mxu0 0.0
    %1191 = vmatpush1.msra.mxu0 0.0
    %1192 = vmatprep.subr.mxu0 0.0
    %1193 = vmatpush1.msra.mxu0 0.0
    %1194 = vmatprep.subr.mxu0 0.0
    %1195 = vmatpush1.msra.mxu0 0.0
    %1196 = vmatprep.subr.mxu0 0.0
    %1197 = vmatpush1.msra.mxu0 0.0
    %1198 = vmatprep.subr.mxu0 0.0
    %1199 = vmatpush1.msra.mxu0 0.0
    %1200 = vmatprep.subr.mxu0 0.0
    %1201 = vmatpush1.msra.mxu0 0.0
    %1202 = vmatprep.subr.mxu0 0.0
    %1203 = vmatpush1.msra.mxu0 0.0
    %1204 = vmatprep.subr.mxu0 0.0
    %1205 = vmatpush1.msra.mxu0 0.0
    %1206 = vmatprep.subr.mxu0 0.0
    %1207 = vmatpush1.msra.mxu0 0.0
    %1208 = vmatprep.subr.mxu0 0.0
    %1209 = vmatpush1.msra.mxu0 0.0
    %1210 = vmatprep.subr.mxu0 0.0
    %1211 = vmatpush1.msra.mxu0 0.0
    %1212 = vmatprep.subr.mxu0 0.0
    %1213 = vmatpush1.msra.mxu0 0.0
    %1214 = vmatprep.mubr.f32.mxu0 0.0
    %v1215 = vand.u32 %v843, 4294901760
    %v1216 = vsub.f32 %v843, %v1215
    %1217 = vmatmul.mubr.f32.gmra.mrb[0].mxu0 %v1216
    %v1218 = vpop.f32.mrb[0].mxu0
    %v1219 = vadd.f32 %v1115, %v1218
    %v1220 = vpop.f32.mrb[0].mxu0
    %1221 = vdwg.mxu0
    %1222 = vmatprep.subr.mxu0 0.0
    %v1223 = vand.u32 %v860, 4294901760
    %1224 = vmatpush1.msra.mxu0 %v1223
    %1225 = vmatprep.subr.mxu0 0.0
    %v1226 = vand.u32 %v861, 4294901760
    %1227 = vmatpush1.msra.mxu0 %v1226
    %1228 = vmatprep.subr.mxu0 0.0
    %v1229 = vand.u32 %v862, 4294901760
    %1230 = vmatpush1.msra.mxu0 %v1229
    %1231 = vmatprep.subr.mxu0 0.0
    %v1232 = vand.u32 %v863, 4294901760
    %1233 = vmatpush1.msra.mxu0 %v1232
    %1234 = vmatprep.subr.mxu0 0.0
    %v1235 = vand.u32 %v864, 4294901760
    %1236 = vmatpush1.msra.mxu0 %v1235
    %1237 = vmatprep.subr.mxu0 0.0
    %v1238 = vand.u32 %v865, 4294901760
    %1239 = vmatpush1.msra.mxu0 %v1238
    %1240 = vmatprep.subr.mxu0 0.0
    %v1241 = vand.u32 %v866, 4294901760
    %1242 = vmatpush1.msra.mxu0 %v1241
    %1243 = vmatprep.subr.mxu0 0.0
    %v1244 = vand.u32 %v867, 4294901760
    %1245 = vmatpush1.msra.mxu0 %v1244
    %1246 = vmatprep.subr.mxu0 0.0
    %v1247 = vand.u32 %v868, 4294901760
    %1248 = vmatpush1.msra.mxu0 %v1247
    %1249 = vmatprep.subr.mxu0 0.0
    %v1250 = vand.u32 %v869, 4294901760
    %1251 = vmatpush1.msra.mxu0 %v1250
    %1252 = vmatprep.subr.mxu0 0.0
    %v1253 = vand.u32 %v870, 4294901760
    %1254 = vmatpush1.msra.mxu0 %v1253
    %1255 = vmatprep.subr.mxu0 0.0
    %v1256 = vand.u32 %v871, 4294901760
    %1257 = vmatpush1.msra.mxu0 %v1256
    %1258 = vmatprep.subr.mxu0 0.0
    %v1259 = vand.u32 %v872, 4294901760
    %1260 = vmatpush1.msra.mxu0 %v1259
    %1261 = vmatprep.subr.mxu0 0.0
    %v1262 = vand.u32 %v873, 4294901760
    %1263 = vmatpush1.msra.mxu0 %v1262
    %1264 = vmatprep.subr.mxu0 0.0
    %v1265 = vand.u32 %v874, 4294901760
    %1266 = vmatpush1.msra.mxu0 %v1265
    %1267 = vmatprep.subr.mxu0 0.0
    %v1268 = vand.u32 %v875, 4294901760
    %1269 = vmatpush1.msra.mxu0 %v1268
    %1270 = vmatprep.subr.mxu0 0.0
    %1271 = vmatpush1.msra.mxu0 0.0
    %1272 = vmatprep.subr.mxu0 0.0
    %1273 = vmatpush1.msra.mxu0 0.0
    %1274 = vmatprep.subr.mxu0 0.0
    %1275 = vmatpush1.msra.mxu0 0.0
    %1276 = vmatprep.subr.mxu0 0.0
    %1277 = vmatpush1.msra.mxu0 0.0
    %1278 = vmatprep.subr.mxu0 0.0
    %1279 = vmatpush1.msra.mxu0 0.0
    %1280 = vmatprep.subr.mxu0 0.0
    %1281 = vmatpush1.msra.mxu0 0.0
    %1282 = vmatprep.subr.mxu0 0.0
    %1283 = vmatpush1.msra.mxu0 0.0
    %1284 = vmatprep.subr.mxu0 0.0
    %1285 = vmatpush1.msra.mxu0 0.0
    %1286 = vmatprep.subr.mxu0 0.0
    %1287 = vmatpush1.msra.mxu0 0.0
    %1288 = vmatprep.subr.mxu0 0.0
    %1289 = vmatpush1.msra.mxu0 0.0
    %1290 = vmatprep.subr.mxu0 0.0
    %1291 = vmatpush1.msra.mxu0 0.0
    %1292 = vmatprep.subr.mxu0 0.0
    %1293 = vmatpush1.msra.mxu0 0.0
    %1294 = vmatprep.subr.mxu0 0.0
    %1295 = vmatpush1.msra.mxu0 0.0
    %1296 = vmatprep.subr.mxu0 0.0
    %1297 = vmatpush1.msra.mxu0 0.0
    %1298 = vmatprep.subr.mxu0 0.0
    %1299 = vmatpush1.msra.mxu0 0.0
    %1300 = vmatprep.subr.mxu0 0.0
    %1301 = vmatpush1.msra.mxu0 0.0
    %1302 = vmatprep.mubr.f32.mxu0 0.0
    %v1303 = vand.u32 %v843, 4294901760
    %v1304 = vsub.f32 %v843, %v1303
    %v1305 = vand.u32 %v1304, 4294901760
    %1306 = vmatmul.mubr.f32.gmra.mrb[0].mxu0 %v1305
    %v1307 = vpop.f32.mrb[0].mxu0
    %v1308 = vadd.f32 %v1219, %v1307
    %v1309 = vpop.f32.mrb[0].mxu0
    %1310 = vdwg.mxu0
    %1311 = vmatprep.subr.mxu0 0.0
    %v1312 = vand.u32 %v860, 4294901760
    %v1313 = vsub.f32 %v860, %v1312
    %v1314 = vand.u32 %v1313, 4294901760
    %1315 = vmatpush1.msra.mxu0 %v1314
    %1316 = vmatprep.subr.mxu0 0.0
    %v1317 = vand.u32 %v861, 4294901760
    %v1318 = vsub.f32 %v861, %v1317
    %v1319 = vand.u32 %v1318, 4294901760
    %1320 = vmatpush1.msra.mxu0 %v1319
    %1321 = vmatprep.subr.mxu0 0.0
    %v1322 = vand.u32 %v862, 4294901760
    %v1323 = vsub.f32 %v862, %v1322
    %v1324 = vand.u32 %v1323, 4294901760
    %1325 = vmatpush1.msra.mxu0 %v1324
    %1326 = vmatprep.subr.mxu0 0.0
    %v1327 = vand.u32 %v863, 4294901760
    %v1328 = vsub.f32 %v863, %v1327
    %v1329 = vand.u32 %v1328, 4294901760
    %1330 = vmatpush1.msra.mxu0 %v1329
    %1331 = vmatprep.subr.mxu0 0.0
    %v1332 = vand.u32 %v864, 4294901760
    %v1333 = vsub.f32 %v864, %v1332
    %v1334 = vand.u32 %v1333, 4294901760
    %1335 = vmatpush1.msra.mxu0 %v1334
    %1336 = vmatprep.subr.mxu0 0.0
    %v1337 = vand.u32 %v865, 4294901760
    %v1338 = vsub.f32 %v865, %v1337
    %v1339 = vand.u32 %v1338, 4294901760
    %1340 = vmatpush1.msra.mxu0 %v1339
    %1341 = vmatprep.subr.mxu0 0.0
    %v1342 = vand.u32 %v866, 4294901760
    %v1343 = vsub.f32 %v866, %v1342
    %v1344 = vand.u32 %v1343, 4294901760
    %1345 = vmatpush1.msra.mxu0 %v1344
    %1346 = vmatprep.subr.mxu0 0.0
    %v1347 = vand.u32 %v867, 4294901760
    %v1348 = vsub.f32 %v867, %v1347
    %v1349 = vand.u32 %v1348, 4294901760
    %1350 = vmatpush1.msra.mxu0 %v1349
    %1351 = vmatprep.subr.mxu0 0.0
    %v1352 = vand.u32 %v868, 4294901760
    %v1353 = vsub.f32 %v868, %v1352
    %v1354 = vand.u32 %v1353, 4294901760
    %1355 = vmatpush1.msra.mxu0 %v1354
    %1356 = vmatprep.subr.mxu0 0.0
    %v1357 = vand.u32 %v869, 4294901760
    %v1358 = vsub.f32 %v869, %v1357
    %v1359 = vand.u32 %v1358, 4294901760
    %1360 = vmatpush1.msra.mxu0 %v1359
    %1361 = vmatprep.subr.mxu0 0.0
    %v1362 = vand.u32 %v870, 4294901760
    %v1363 = vsub.f32 %v870, %v1362
    %v1364 = vand.u32 %v1363, 4294901760
    %1365 = vmatpush1.msra.mxu0 %v1364
    %1366 = vmatprep.subr.mxu0 0.0
    %v1367 = vand.u32 %v871, 4294901760
    %v1368 = vsub.f32 %v871, %v1367
    %v1369 = vand.u32 %v1368, 4294901760
    %1370 = vmatpush1.msra.mxu0 %v1369
    %1371 = vmatprep.subr.mxu0 0.0
    %v1372 = vand.u32 %v872, 4294901760
    %v1373 = vsub.f32 %v872, %v1372
    %v1374 = vand.u32 %v1373, 4294901760
    %1375 = vmatpush1.msra.mxu0 %v1374
    %1376 = vmatprep.subr.mxu0 0.0
    %v1377 = vand.u32 %v873, 4294901760
    %v1378 = vsub.f32 %v873, %v1377
    %v1379 = vand.u32 %v1378, 4294901760
    %1380 = vmatpush1.msra.mxu0 %v1379
    %1381 = vmatprep.subr.mxu0 0.0
    %v1382 = vand.u32 %v874, 4294901760
    %v1383 = vsub.f32 %v874, %v1382
    %v1384 = vand.u32 %v1383, 4294901760
    %1385 = vmatpush1.msra.mxu0 %v1384
    %1386 = vmatprep.subr.mxu0 0.0
    %v1387 = vand.u32 %v875, 4294901760
    %v1388 = vsub.f32 %v875, %v1387
    %v1389 = vand.u32 %v1388, 4294901760
    %1390 = vmatpush1.msra.mxu0 %v1389
    %1391 = vmatprep.subr.mxu0 0.0
    %1392 = vmatpush1.msra.mxu0 0.0
    %1393 = vmatprep.subr.mxu0 0.0
    %1394 = vmatpush1.msra.mxu0 0.0
    %1395 = vmatprep.subr.mxu0 0.0
    %1396 = vmatpush1.msra.mxu0 0.0
    %1397 = vmatprep.subr.mxu0 0.0
    %1398 = vmatpush1.msra.mxu0 0.0
    %1399 = vmatprep.subr.mxu0 0.0
    %1400 = vmatpush1.msra.mxu0 0.0
    %1401 = vmatprep.subr.mxu0 0.0
    %1402 = vmatpush1.msra.mxu0 0.0
    %1403 = vmatprep.subr.mxu0 0.0
    %1404 = vmatpush1.msra.mxu0 0.0
    %1405 = vmatprep.subr.mxu0 0.0
    %1406 = vmatpush1.msra.mxu0 0.0
    %1407 = vmatprep.subr.mxu0 0.0
    %1408 = vmatpush1.msra.mxu0 0.0
    %1409 = vmatprep.subr.mxu0 0.0
    %1410 = vmatpush1.msra.mxu0 0.0
    %1411 = vmatprep.subr.mxu0 0.0
    %1412 = vmatpush1.msra.mxu0 0.0
    %1413 = vmatprep.subr.mxu0 0.0
    %1414 = vmatpush1.msra.mxu0 0.0
    %1415 = vmatprep.subr.mxu0 0.0
    %1416 = vmatpush1.msra.mxu0 0.0
    %1417 = vmatprep.subr.mxu0 0.0
    %1418 = vmatpush1.msra.mxu0 0.0
    %1419 = vmatprep.subr.mxu0 0.0
    %1420 = vmatpush1.msra.mxu0 0.0
    %1421 = vmatprep.subr.mxu0 0.0
    %1422 = vmatpush1.msra.mxu0 0.0
    %1423 = vmatprep.mubr.f32.mxu0 0.0
    %v1424 = vand.u32 %v843, 4294901760
    %1425 = vmatmul.mubr.f32.gmra.mrb[0].mxu0 %v1424
    %v1426 = vpop.f32.mrb[0].mxu0
    %v1427 = vadd.f32 %v1308, %v1426
    %v1428 = vpop.f32.mrb[0].mxu0
    %1429 = vdwg.mxu0
    %1430 = vmatprep.subr.mxu0 0.0
    %v1431 = vand.u32 %v860, 4294901760
    %1432 = vmatpush1.msra.mxu0 %v1431
    %1433 = vmatprep.subr.mxu0 0.0
    %v1434 = vand.u32 %v861, 4294901760
    %1435 = vmatpush1.msra.mxu0 %v1434
    %1436 = vmatprep.subr.mxu0 0.0
    %v1437 = vand.u32 %v862, 4294901760
    %1438 = vmatpush1.msra.mxu0 %v1437
    %1439 = vmatprep.subr.mxu0 0.0
    %v1440 = vand.u32 %v863, 4294901760
    %1441 = vmatpush1.msra.mxu0 %v1440
    %1442 = vmatprep.subr.mxu0 0.0
    %v1443 = vand.u32 %v864, 4294901760
    %1444 = vmatpush1.msra.mxu0 %v1443
    %1445 = vmatprep.subr.mxu0 0.0
    %v1446 = vand.u32 %v865, 4294901760
    %1447 = vmatpush1.msra.mxu0 %v1446
    %1448 = vmatprep.subr.mxu0 0.0
    %v1449 = vand.u32 %v866, 4294901760
    %1450 = vmatpush1.msra.mxu0 %v1449
    %1451 = vmatprep.subr.mxu0 0.0
    %v1452 = vand.u32 %v867, 4294901760
    %1453 = vmatpush1.msra.mxu0 %v1452
    %1454 = vmatprep.subr.mxu0 0.0
    %v1455 = vand.u32 %v868, 4294901760
    %1456 = vmatpush1.msra.mxu0 %v1455
    %1457 = vmatprep.subr.mxu0 0.0
    %v1458 = vand.u32 %v869, 4294901760
    %1459 = vmatpush1.msra.mxu0 %v1458
    %1460 = vmatprep.subr.mxu0 0.0
    %v1461 = vand.u32 %v870, 4294901760
    %1462 = vmatpush1.msra.mxu0 %v1461
    %1463 = vmatprep.subr.mxu0 0.0
    %v1464 = vand.u32 %v871, 4294901760
    %1465 = vmatpush1.msra.mxu0 %v1464
    %1466 = vmatprep.subr.mxu0 0.0
    %v1467 = vand.u32 %v872, 4294901760
    %1468 = vmatpush1.msra.mxu0 %v1467
    %1469 = vmatprep.subr.mxu0 0.0
    %v1470 = vand.u32 %v873, 4294901760
    %1471 = vmatpush1.msra.mxu0 %v1470
    %1472 = vmatprep.subr.mxu0 0.0
    %v1473 = vand.u32 %v874, 4294901760
    %1474 = vmatpush1.msra.mxu0 %v1473
    %1475 = vmatprep.subr.mxu0 0.0
    %v1476 = vand.u32 %v875, 4294901760
    %1477 = vmatpush1.msra.mxu0 %v1476
    %1478 = vmatprep.subr.mxu0 0.0
    %1479 = vmatpush1.msra.mxu0 0.0
    %1480 = vmatprep.subr.mxu0 0.0
    %1481 = vmatpush1.msra.mxu0 0.0
    %1482 = vmatprep.subr.mxu0 0.0
    %1483 = vmatpush1.msra.mxu0 0.0
    %1484 = vmatprep.subr.mxu0 0.0
    %1485 = vmatpush1.msra.mxu0 0.0
    %1486 = vmatprep.subr.mxu0 0.0
    %1487 = vmatpush1.msra.mxu0 0.0
    %1488 = vmatprep.subr.mxu0 0.0
    %1489 = vmatpush1.msra.mxu0 0.0
    %1490 = vmatprep.subr.mxu0 0.0
    %1491 = vmatpush1.msra.mxu0 0.0
    %1492 = vmatprep.subr.mxu0 0.0
    %1493 = vmatpush1.msra.mxu0 0.0
    %1494 = vmatprep.subr.mxu0 0.0
    %1495 = vmatpush1.msra.mxu0 0.0
    %1496 = vmatprep.subr.mxu0 0.0
    %1497 = vmatpush1.msra.mxu0 0.0
    %1498 = vmatprep.subr.mxu0 0.0
    %1499 = vmatpush1.msra.mxu0 0.0
    %1500 = vmatprep.subr.mxu0 0.0
    %1501 = vmatpush1.msra.mxu0 0.0
    %1502 = vmatprep.subr.mxu0 0.0
    %1503 = vmatpush1.msra.mxu0 0.0
    %1504 = vmatprep.subr.mxu0 0.0
    %1505 = vmatpush1.msra.mxu0 0.0
    %1506 = vmatprep.subr.mxu0 0.0
    %1507 = vmatpush1.msra.mxu0 0.0
    %1508 = vmatprep.subr.mxu0 0.0
    %1509 = vmatpush1.msra.mxu0 0.0
    %1510 = vmatprep.mubr.f32.mxu0 0.0
    %v1511 = vand.u32 %v843, 4294901760
    %1512 = vmatmul.mubr.f32.gmra.mrb[0].mxu0 %v1511
    %v1513 = vpop.f32.mrb[0].mxu0
    %v1514 = vadd.f32 %v1427, %v1513
    %v1515 = vpop.f32.mrb[0].mxu0
    %1516 = vdwg.mxu0
    %1517 = vmatprep.subr.mxu0 0.0
    %v1518 = vand.u32 %v844, 4294901760
    %1519 = vmatpush1.msra.mxu0 %v1518
    %1520 = vmatprep.subr.mxu0 0.0
    %v1521 = vand.u32 %v845, 4294901760
    %1522 = vmatpush1.msra.mxu0 %v1521
    %1523 = vmatprep.subr.mxu0 0.0
    %v1524 = vand.u32 %v846, 4294901760
    %1525 = vmatpush1.msra.mxu0 %v1524
    %1526 = vmatprep.subr.mxu0 0.0
    %v1527 = vand.u32 %v847, 4294901760
    %1528 = vmatpush1.msra.mxu0 %v1527
    %1529 = vmatprep.subr.mxu0 0.0
    %v1530 = vand.u32 %v848, 4294901760
    %1531 = vmatpush1.msra.mxu0 %v1530
    %1532 = vmatprep.subr.mxu0 0.0
    %v1533 = vand.u32 %v849, 4294901760
    %1534 = vmatpush1.msra.mxu0 %v1533
    %1535 = vmatprep.subr.mxu0 0.0
    %v1536 = vand.u32 %v850, 4294901760
    %1537 = vmatpush1.msra.mxu0 %v1536
    %1538 = vmatprep.subr.mxu0 0.0
    %v1539 = vand.u32 %v851, 4294901760
    %1540 = vmatpush1.msra.mxu0 %v1539
    %1541 = vmatprep.subr.mxu0 0.0
    %v1542 = vand.u32 %v852, 4294901760
    %1543 = vmatpush1.msra.mxu0 %v1542
    %1544 = vmatprep.subr.mxu0 0.0
    %v1545 = vand.u32 %v853, 4294901760
    %1546 = vmatpush1.msra.mxu0 %v1545
    %1547 = vmatprep.subr.mxu0 0.0
    %v1548 = vand.u32 %v854, 4294901760
    %1549 = vmatpush1.msra.mxu0 %v1548
    %1550 = vmatprep.subr.mxu0 0.0
    %v1551 = vand.u32 %v855, 4294901760
    %1552 = vmatpush1.msra.mxu0 %v1551
    %1553 = vmatprep.subr.mxu0 0.0
    %v1554 = vand.u32 %v856, 4294901760
    %1555 = vmatpush1.msra.mxu0 %v1554
    %1556 = vmatprep.subr.mxu0 0.0
    %v1557 = vand.u32 %v857, 4294901760
    %1558 = vmatpush1.msra.mxu0 %v1557
    %1559 = vmatprep.subr.mxu0 0.0
    %v1560 = vand.u32 %v858, 4294901760
    %1561 = vmatpush1.msra.mxu0 %v1560
    %1562 = vmatprep.subr.mxu0 0.0
    %v1563 = vand.u32 %v859, 4294901760
    %1564 = vmatpush1.msra.mxu0 %v1563
    %1565 = vmatprep.subr.mxu0 0.0
    %1566 = vmatpush1.msra.mxu0 0.0
    %1567 = vmatprep.subr.mxu0 0.0
    %1568 = vmatpush1.msra.mxu0 0.0
    %1569 = vmatprep.subr.mxu0 0.0
    %1570 = vmatpush1.msra.mxu0 0.0
    %1571 = vmatprep.subr.mxu0 0.0
    %1572 = vmatpush1.msra.mxu0 0.0
    %1573 = vmatprep.subr.mxu0 0.0
    %1574 = vmatpush1.msra.mxu0 0.0
    %1575 = vmatprep.subr.mxu0 0.0
    %1576 = vmatpush1.msra.mxu0 0.0
    %1577 = vmatprep.subr.mxu0 0.0
    %1578 = vmatpush1.msra.mxu0 0.0
    %1579 = vmatprep.subr.mxu0 0.0
    %1580 = vmatpush1.msra.mxu0 0.0
    %1581 = vmatprep.subr.mxu0 0.0
    %1582 = vmatpush1.msra.mxu0 0.0
    %1583 = vmatprep.subr.mxu0 0.0
    %1584 = vmatpush1.msra.mxu0 0.0
    %1585 = vmatprep.subr.mxu0 0.0
    %1586 = vmatpush1.msra.mxu0 0.0
    %1587 = vmatprep.subr.mxu0 0.0
    %1588 = vmatpush1.msra.mxu0 0.0
    %1589 = vmatprep.subr.mxu0 0.0
    %1590 = vmatpush1.msra.mxu0 0.0
    %1591 = vmatprep.subr.mxu0 0.0
    %1592 = vmatpush1.msra.mxu0 0.0
    %1593 = vmatprep.subr.mxu0 0.0
    %1594 = vmatpush1.msra.mxu0 0.0
    %1595 = vmatprep.subr.mxu0 0.0
    %1596 = vmatpush1.msra.mxu0 0.0
    %1597 = vmatprep.mubr.f32.mxu0 0.0
    %v1598 = vand.u32 %v740, 4294901760
    %v1599 = vsub.f32 %v740, %v1598
    %v1600 = vand.u32 %v1599, 4294901760
    %v1601 = vsub.f32 %v1599, %v1600
    %v1602 = vand.u32 %v1601, 4294901760
    %1603 = vmatmul.mubr.f32.gmra.mrb[0].mxu0 %v1602
    %v1604 = vpop.f32.mrb[0].mxu0
    %v1605 = vadd.f32 %v1514, %v1604
    %v1606 = vpop.f32.mrb[0].mxu0
    %1607 = vdwg.mxu0
    %1608 = vmatprep.subr.mxu0 0.0
    %v1609 = vand.u32 %v844, 4294901760
    %v1610 = vsub.f32 %v844, %v1609
    %v1611 = vand.u32 %v1610, 4294901760
    %v1612 = vsub.f32 %v1610, %v1611
    %v1613 = vand.u32 %v1612, 4294901760
    %1614 = vmatpush1.msra.mxu0 %v1613
    %1615 = vmatprep.subr.mxu0 0.0
    %v1616 = vand.u32 %v845, 4294901760
    %v1617 = vsub.f32 %v845, %v1616
    %v1618 = vand.u32 %v1617, 4294901760
    %v1619 = vsub.f32 %v1617, %v1618
    %v1620 = vand.u32 %v1619, 4294901760
    %1621 = vmatpush1.msra.mxu0 %v1620
    %1622 = vmatprep.subr.mxu0 0.0
    %v1623 = vand.u32 %v846, 4294901760
    %v1624 = vsub.f32 %v846, %v1623
    %v1625 = vand.u32 %v1624, 4294901760
    %v1626 = vsub.f32 %v1624, %v1625
    %v1627 = vand.u32 %v1626, 4294901760
    %1628 = vmatpush1.msra.mxu0 %v1627
    %1629 = vmatprep.subr.mxu0 0.0
    %v1630 = vand.u32 %v847, 4294901760
    %v1631 = vsub.f32 %v847, %v1630
    %v1632 = vand.u32 %v1631, 4294901760
    %v1633 = vsub.f32 %v1631, %v1632
    %v1634 = vand.u32 %v1633, 4294901760
    %1635 = vmatpush1.msra.mxu0 %v1634
    %1636 = vmatprep.subr.mxu0 0.0
    %v1637 = vand.u32 %v848, 4294901760
    %v1638 = vsub.f32 %v848, %v1637
    %v1639 = vand.u32 %v1638, 4294901760
    %v1640 = vsub.f32 %v1638, %v1639
    %v1641 = vand.u32 %v1640, 4294901760
    %1642 = vmatpush1.msra.mxu0 %v1641
    %1643 = vmatprep.subr.mxu0 0.0
    %v1644 = vand.u32 %v849, 4294901760
    %v1645 = vsub.f32 %v849, %v1644
    %v1646 = vand.u32 %v1645, 4294901760
    %v1647 = vsub.f32 %v1645, %v1646
    %v1648 = vand.u32 %v1647, 4294901760
    %1649 = vmatpush1.msra.mxu0 %v1648
    %1650 = vmatprep.subr.mxu0 0.0
    %v1651 = vand.u32 %v850, 4294901760
    %v1652 = vsub.f32 %v850, %v1651
    %v1653 = vand.u32 %v1652, 4294901760
    %v1654 = vsub.f32 %v1652, %v1653
    %v1655 = vand.u32 %v1654, 4294901760
    %1656 = vmatpush1.msra.mxu0 %v1655
    %1657 = vmatprep.subr.mxu0 0.0
    %v1658 = vand.u32 %v851, 4294901760
    %v1659 = vsub.f32 %v851, %v1658
    %v1660 = vand.u32 %v1659, 4294901760
    %v1661 = vsub.f32 %v1659, %v1660
    %v1662 = vand.u32 %v1661, 4294901760
    %1663 = vmatpush1.msra.mxu0 %v1662
    %1664 = vmatprep.subr.mxu0 0.0
    %v1665 = vand.u32 %v852, 4294901760
    %v1666 = vsub.f32 %v852, %v1665
    %v1667 = vand.u32 %v1666, 4294901760
    %v1668 = vsub.f32 %v1666, %v1667
    %v1669 = vand.u32 %v1668, 4294901760
    %1670 = vmatpush1.msra.mxu0 %v1669
    %1671 = vmatprep.subr.mxu0 0.0
    %v1672 = vand.u32 %v853, 4294901760
    %v1673 = vsub.f32 %v853, %v1672
    %v1674 = vand.u32 %v1673, 4294901760
    %v1675 = vsub.f32 %v1673, %v1674
    %v1676 = vand.u32 %v1675, 4294901760
    %1677 = vmatpush1.msra.mxu0 %v1676
    %1678 = vmatprep.subr.mxu0 0.0
    %v1679 = vand.u32 %v854, 4294901760
    %v1680 = vsub.f32 %v854, %v1679
    %v1681 = vand.u32 %v1680, 4294901760
    %v1682 = vsub.f32 %v1680, %v1681
    %v1683 = vand.u32 %v1682, 4294901760
    %1684 = vmatpush1.msra.mxu0 %v1683
    %1685 = vmatprep.subr.mxu0 0.0
    %v1686 = vand.u32 %v855, 4294901760
    %v1687 = vsub.f32 %v855, %v1686
    %v1688 = vand.u32 %v1687, 4294901760
    %v1689 = vsub.f32 %v1687, %v1688
    %v1690 = vand.u32 %v1689, 4294901760
    %1691 = vmatpush1.msra.mxu0 %v1690
    %1692 = vmatprep.subr.mxu0 0.0
    %v1693 = vand.u32 %v856, 4294901760
    %v1694 = vsub.f32 %v856, %v1693
    %v1695 = vand.u32 %v1694, 4294901760
    %v1696 = vsub.f32 %v1694, %v1695
    %v1697 = vand.u32 %v1696, 4294901760
    %1698 = vmatpush1.msra.mxu0 %v1697
    %1699 = vmatprep.subr.mxu0 0.0
    %v1700 = vand.u32 %v857, 4294901760
    %v1701 = vsub.f32 %v857, %v1700
    %v1702 = vand.u32 %v1701, 4294901760
    %v1703 = vsub.f32 %v1701, %v1702
    %v1704 = vand.u32 %v1703, 4294901760
    %1705 = vmatpush1.msra.mxu0 %v1704
    %1706 = vmatprep.subr.mxu0 0.0
    %v1707 = vand.u32 %v858, 4294901760
    %v1708 = vsub.f32 %v858, %v1707
    %v1709 = vand.u32 %v1708, 4294901760
    %v1710 = vsub.f32 %v1708, %v1709
    %v1711 = vand.u32 %v1710, 4294901760
    %1712 = vmatpush1.msra.mxu0 %v1711
    %1713 = vmatprep.subr.mxu0 0.0
    %v1714 = vand.u32 %v859, 4294901760
    %v1715 = vsub.f32 %v859, %v1714
    %v1716 = vand.u32 %v1715, 4294901760
    %v1717 = vsub.f32 %v1715, %v1716
    %v1718 = vand.u32 %v1717, 4294901760
    %1719 = vmatpush1.msra.mxu0 %v1718
    %1720 = vmatprep.subr.mxu0 0.0
    %1721 = vmatpush1.msra.mxu0 0.0
    %1722 = vmatprep.subr.mxu0 0.0
    %1723 = vmatpush1.msra.mxu0 0.0
    %1724 = vmatprep.subr.mxu0 0.0
    %1725 = vmatpush1.msra.mxu0 0.0
    %1726 = vmatprep.subr.mxu0 0.0
    %1727 = vmatpush1.msra.mxu0 0.0
    %1728 = vmatprep.subr.mxu0 0.0
    %1729 = vmatpush1.msra.mxu0 0.0
    %1730 = vmatprep.subr.mxu0 0.0
    %1731 = vmatpush1.msra.mxu0 0.0
    %1732 = vmatprep.subr.mxu0 0.0
    %1733 = vmatpush1.msra.mxu0 0.0
    %1734 = vmatprep.subr.mxu0 0.0
    %1735 = vmatpush1.msra.mxu0 0.0
    %1736 = vmatprep.subr.mxu0 0.0
    %1737 = vmatpush1.msra.mxu0 0.0
    %1738 = vmatprep.subr.mxu0 0.0
    %1739 = vmatpush1.msra.mxu0 0.0
    %1740 = vmatprep.subr.mxu0 0.0
    %1741 = vmatpush1.msra.mxu0 0.0
    %1742 = vmatprep.subr.mxu0 0.0
    %1743 = vmatpush1.msra.mxu0 0.0
    %1744 = vmatprep.subr.mxu0 0.0
    %1745 = vmatpush1.msra.mxu0 0.0
    %1746 = vmatprep.subr.mxu0 0.0
    %1747 = vmatpush1.msra.mxu0 0.0
    %1748 = vmatprep.subr.mxu0 0.0
    %1749 = vmatpush1.msra.mxu0 0.0
    %1750 = vmatprep.subr.mxu0 0.0
    %1751 = vmatpush1.msra.mxu0 0.0
    %1752 = vmatprep.mubr.f32.mxu0 0.0
    %v1753 = vand.u32 %v740, 4294901760
    %1754 = vmatmul.mubr.f32.gmra.mrb[0].mxu0 %v1753
    %v1755 = vpop.f32.mrb[0].mxu0
    %v1756 = vadd.f32 %v1605, %v1755
    %v1757 = vpop.f32.mrb[0].mxu0
    %1758 = vdwg.mxu0
    %1759 = vmatprep.subr.mxu0 0.0
    %v1760 = vand.u32 %v844, 4294901760
    %v1761 = vsub.f32 %v844, %v1760
    %1762 = vmatpush1.msra.mxu0 %v1761
    %1763 = vmatprep.subr.mxu0 0.0
    %v1764 = vand.u32 %v845, 4294901760
    %v1765 = vsub.f32 %v845, %v1764
    %1766 = vmatpush1.msra.mxu0 %v1765
    %1767 = vmatprep.subr.mxu0 0.0
    %v1768 = vand.u32 %v846, 4294901760
    %v1769 = vsub.f32 %v846, %v1768
    %1770 = vmatpush1.msra.mxu0 %v1769
    %1771 = vmatprep.subr.mxu0 0.0
    %v1772 = vand.u32 %v847, 4294901760
    %v1773 = vsub.f32 %v847, %v1772
    %1774 = vmatpush1.msra.mxu0 %v1773
    %1775 = vmatprep.subr.mxu0 0.0
    %v1776 = vand.u32 %v848, 4294901760
    %v1777 = vsub.f32 %v848, %v1776
    %1778 = vmatpush1.msra.mxu0 %v1777
    %1779 = vmatprep.subr.mxu0 0.0
    %v1780 = vand.u32 %v849, 4294901760
    %v1781 = vsub.f32 %v849, %v1780
    %1782 = vmatpush1.msra.mxu0 %v1781
    %1783 = vmatprep.subr.mxu0 0.0
    %v1784 = vand.u32 %v850, 4294901760
    %v1785 = vsub.f32 %v850, %v1784
    %1786 = vmatpush1.msra.mxu0 %v1785
    %1787 = vmatprep.subr.mxu0 0.0
    %v1788 = vand.u32 %v851, 4294901760
    %v1789 = vsub.f32 %v851, %v1788
    %1790 = vmatpush1.msra.mxu0 %v1789
    %1791 = vmatprep.subr.mxu0 0.0
    %v1792 = vand.u32 %v852, 4294901760
    %v1793 = vsub.f32 %v852, %v1792
    %1794 = vmatpush1.msra.mxu0 %v1793
    %1795 = vmatprep.subr.mxu0 0.0
    %v1796 = vand.u32 %v853, 4294901760
    %v1797 = vsub.f32 %v853, %v1796
    %1798 = vmatpush1.msra.mxu0 %v1797
    %1799 = vmatprep.subr.mxu0 0.0
    %v1800 = vand.u32 %v854, 4294901760
    %v1801 = vsub.f32 %v854, %v1800
    %1802 = vmatpush1.msra.mxu0 %v1801
    %1803 = vmatprep.subr.mxu0 0.0
    %v1804 = vand.u32 %v855, 4294901760
    %v1805 = vsub.f32 %v855, %v1804
    %1806 = vmatpush1.msra.mxu0 %v1805
    %1807 = vmatprep.subr.mxu0 0.0
    %v1808 = vand.u32 %v856, 4294901760
    %v1809 = vsub.f32 %v856, %v1808
    %1810 = vmatpush1.msra.mxu0 %v1809
    %1811 = vmatprep.subr.mxu0 0.0
    %v1812 = vand.u32 %v857, 4294901760
    %v1813 = vsub.f32 %v857, %v1812
    %1814 = vmatpush1.msra.mxu0 %v1813
    %1815 = vmatprep.subr.mxu0 0.0
    %v1816 = vand.u32 %v858, 4294901760
    %v1817 = vsub.f32 %v858, %v1816
    %1818 = vmatpush1.msra.mxu0 %v1817
    %1819 = vmatprep.subr.mxu0 0.0
    %v1820 = vand.u32 %v859, 4294901760
    %v1821 = vsub.f32 %v859, %v1820
    %1822 = vmatpush1.msra.mxu0 %v1821
    %1823 = vmatprep.subr.mxu0 0.0
    %1824 = vmatpush1.msra.mxu0 0.0
    %1825 = vmatprep.subr.mxu0 0.0
    %1826 = vmatpush1.msra.mxu0 0.0
    %1827 = vmatprep.subr.mxu0 0.0
    %1828 = vmatpush1.msra.mxu0 0.0
    %1829 = vmatprep.subr.mxu0 0.0
    %1830 = vmatpush1.msra.mxu0 0.0
    %1831 = vmatprep.subr.mxu0 0.0
    %1832 = vmatpush1.msra.mxu0 0.0
    %1833 = vmatprep.subr.mxu0 0.0
    %1834 = vmatpush1.msra.mxu0 0.0
    %1835 = vmatprep.subr.mxu0 0.0
    %1836 = vmatpush1.msra.mxu0 0.0
    %1837 = vmatprep.subr.mxu0 0.0
    %1838 = vmatpush1.msra.mxu0 0.0
    %1839 = vmatprep.subr.mxu0 0.0
    %1840 = vmatpush1.msra.mxu0 0.0
    %1841 = vmatprep.subr.mxu0 0.0
    %1842 = vmatpush1.msra.mxu0 0.0
    %1843 = vmatprep.subr.mxu0 0.0
    %1844 = vmatpush1.msra.mxu0 0.0
    %1845 = vmatprep.subr.mxu0 0.0
    %1846 = vmatpush1.msra.mxu0 0.0
    %1847 = vmatprep.subr.mxu0 0.0
    %1848 = vmatpush1.msra.mxu0 0.0
    %1849 = vmatprep.subr.mxu0 0.0
    %1850 = vmatpush1.msra.mxu0 0.0
    %1851 = vmatprep.subr.mxu0 0.0
    %1852 = vmatpush1.msra.mxu0 0.0
    %1853 = vmatprep.subr.mxu0 0.0
    %1854 = vmatpush1.msra.mxu0 0.0
    %1855 = vmatprep.mubr.f32.mxu0 0.0
    %v1856 = vand.u32 %v740, 4294901760
    %v1857 = vsub.f32 %v740, %v1856
    %1858 = vmatmul.mubr.f32.gmra.mrb[0].mxu0 %v1857
    %v1859 = vpop.f32.mrb[0].mxu0
    %v1860 = vadd.f32 %v1756, %v1859
    %v1861 = vpop.f32.mrb[0].mxu0
    %1862 = vdwg.mxu0
    %1863 = vmatprep.subr.mxu0 0.0
    %v1864 = vand.u32 %v844, 4294901760
    %1865 = vmatpush1.msra.mxu0 %v1864
    %1866 = vmatprep.subr.mxu0 0.0
    %v1867 = vand.u32 %v845, 4294901760
    %1868 = vmatpush1.msra.mxu0 %v1867
    %1869 = vmatprep.subr.mxu0 0.0
    %v1870 = vand.u32 %v846, 4294901760
    %1871 = vmatpush1.msra.mxu0 %v1870
    %1872 = vmatprep.subr.mxu0 0.0
    %v1873 = vand.u32 %v847, 4294901760
    %1874 = vmatpush1.msra.mxu0 %v1873
    %1875 = vmatprep.subr.mxu0 0.0
    %v1876 = vand.u32 %v848, 4294901760
    %1877 = vmatpush1.msra.mxu0 %v1876
    %1878 = vmatprep.subr.mxu0 0.0
    %v1879 = vand.u32 %v849, 4294901760
    %1880 = vmatpush1.msra.mxu0 %v1879
    %1881 = vmatprep.subr.mxu0 0.0
    %v1882 = vand.u32 %v850, 4294901760
    %1883 = vmatpush1.msra.mxu0 %v1882
    %1884 = vmatprep.subr.mxu0 0.0
    %v1885 = vand.u32 %v851, 4294901760
    %1886 = vmatpush1.msra.mxu0 %v1885
    %1887 = vmatprep.subr.mxu0 0.0
    %v1888 = vand.u32 %v852, 4294901760
    %1889 = vmatpush1.msra.mxu0 %v1888
    %1890 = vmatprep.subr.mxu0 0.0
    %v1891 = vand.u32 %v853, 4294901760
    %1892 = vmatpush1.msra.mxu0 %v1891
    %1893 = vmatprep.subr.mxu0 0.0
    %v1894 = vand.u32 %v854, 4294901760
    %1895 = vmatpush1.msra.mxu0 %v1894
    %1896 = vmatprep.subr.mxu0 0.0
    %v1897 = vand.u32 %v855, 4294901760
    %1898 = vmatpush1.msra.mxu0 %v1897
    %1899 = vmatprep.subr.mxu0 0.0
    %v1900 = vand.u32 %v856, 4294901760
    %1901 = vmatpush1.msra.mxu0 %v1900
    %1902 = vmatprep.subr.mxu0 0.0
    %v1903 = vand.u32 %v857, 4294901760
    %1904 = vmatpush1.msra.mxu0 %v1903
    %1905 = vmatprep.subr.mxu0 0.0
    %v1906 = vand.u32 %v858, 4294901760
    %1907 = vmatpush1.msra.mxu0 %v1906
    %1908 = vmatprep.subr.mxu0 0.0
    %v1909 = vand.u32 %v859, 4294901760
    %1910 = vmatpush1.msra.mxu0 %v1909
    %1911 = vmatprep.subr.mxu0 0.0
    %1912 = vmatpush1.msra.mxu0 0.0
    %1913 = vmatprep.subr.mxu0 0.0
    %1914 = vmatpush1.msra.mxu0 0.0
    %1915 = vmatprep.subr.mxu0 0.0
    %1916 = vmatpush1.msra.mxu0 0.0
    %1917 = vmatprep.subr.mxu0 0.0
    %1918 = vmatpush1.msra.mxu0 0.0
    %1919 = vmatprep.subr.mxu0 0.0
    %1920 = vmatpush1.msra.mxu0 0.0
    %1921 = vmatprep.subr.mxu0 0.0
    %1922 = vmatpush1.msra.mxu0 0.0
    %1923 = vmatprep.subr.mxu0 0.0
    %1924 = vmatpush1.msra.mxu0 0.0
    %1925 = vmatprep.subr.mxu0 0.0
    %1926 = vmatpush1.msra.mxu0 0.0
    %1927 = vmatprep.subr.mxu0 0.0
    %1928 = vmatpush1.msra.mxu0 0.0
    %1929 = vmatprep.subr.mxu0 0.0
    %1930 = vmatpush1.msra.mxu0 0.0
    %1931 = vmatprep.subr.mxu0 0.0
    %1932 = vmatpush1.msra.mxu0 0.0
    %1933 = vmatprep.subr.mxu0 0.0
    %1934 = vmatpush1.msra.mxu0 0.0
    %1935 = vmatprep.subr.mxu0 0.0
    %1936 = vmatpush1.msra.mxu0 0.0
    %1937 = vmatprep.subr.mxu0 0.0
    %1938 = vmatpush1.msra.mxu0 0.0
    %1939 = vmatprep.subr.mxu0 0.0
    %1940 = vmatpush1.msra.mxu0 0.0
    %1941 = vmatprep.subr.mxu0 0.0
    %1942 = vmatpush1.msra.mxu0 0.0
    %1943 = vmatprep.mubr.f32.mxu0 0.0
    %v1944 = vand.u32 %v740, 4294901760
    %v1945 = vsub.f32 %v740, %v1944
    %v1946 = vand.u32 %v1945, 4294901760
    %1947 = vmatmul.mubr.f32.gmra.mrb[0].mxu0 %v1946
    %v1948 = vpop.f32.mrb[0].mxu0
    %v1949 = vadd.f32 %v1860, %v1948
    %v1950 = vpop.f32.mrb[0].mxu0
    %1951 = vdwg.mxu0
    %1952 = vmatprep.subr.mxu0 0.0
    %v1953 = vand.u32 %v844, 4294901760
    %v1954 = vsub.f32 %v844, %v1953
    %v1955 = vand.u32 %v1954, 4294901760
    %1956 = vmatpush1.msra.mxu0 %v1955
    %1957 = vmatprep.subr.mxu0 0.0
    %v1958 = vand.u32 %v845, 4294901760
    %v1959 = vsub.f32 %v845, %v1958
    %v1960 = vand.u32 %v1959, 4294901760
    %1961 = vmatpush1.msra.mxu0 %v1960
    %1962 = vmatprep.subr.mxu0 0.0
    %v1963 = vand.u32 %v846, 4294901760
    %v1964 = vsub.f32 %v846, %v1963
    %v1965 = vand.u32 %v1964, 4294901760
    %1966 = vmatpush1.msra.mxu0 %v1965
    %1967 = vmatprep.subr.mxu0 0.0
    %v1968 = vand.u32 %v847, 4294901760
    %v1969 = vsub.f32 %v847, %v1968
    %v1970 = vand.u32 %v1969, 4294901760
    %1971 = vmatpush1.msra.mxu0 %v1970
    %1972 = vmatprep.subr.mxu0 0.0
    %v1973 = vand.u32 %v848, 4294901760
    %v1974 = vsub.f32 %v848, %v1973
    %v1975 = vand.u32 %v1974, 4294901760
    %1976 = vmatpush1.msra.mxu0 %v1975
    %1977 = vmatprep.subr.mxu0 0.0
    %v1978 = vand.u32 %v849, 4294901760
    %v1979 = vsub.f32 %v849, %v1978
    %v1980 = vand.u32 %v1979, 4294901760
    %1981 = vmatpush1.msra.mxu0 %v1980
    %1982 = vmatprep.subr.mxu0 0.0
    %v1983 = vand.u32 %v850, 4294901760
    %v1984 = vsub.f32 %v850, %v1983
    %v1985 = vand.u32 %v1984, 4294901760
    %1986 = vmatpush1.msra.mxu0 %v1985
    %1987 = vmatprep.subr.mxu0 0.0
    %v1988 = vand.u32 %v851, 4294901760
    %v1989 = vsub.f32 %v851, %v1988
    %v1990 = vand.u32 %v1989, 4294901760
    %1991 = vmatpush1.msra.mxu0 %v1990
    %1992 = vmatprep.subr.mxu0 0.0
    %v1993 = vand.u32 %v852, 4294901760
    %v1994 = vsub.f32 %v852, %v1993
    %v1995 = vand.u32 %v1994, 4294901760
    %1996 = vmatpush1.msra.mxu0 %v1995
    %1997 = vmatprep.subr.mxu0 0.0
    %v1998 = vand.u32 %v853, 4294901760
    %v1999 = vsub.f32 %v853, %v1998
    %v2000 = vand.u32 %v1999, 4294901760
    %2001 = vmatpush1.msra.mxu0 %v2000
    %2002 = vmatprep.subr.mxu0 0.0
    %v2003 = vand.u32 %v854, 4294901760
    %v2004 = vsub.f32 %v854, %v2003
    %v2005 = vand.u32 %v2004, 4294901760
    %2006 = vmatpush1.msra.mxu0 %v2005
    %2007 = vmatprep.subr.mxu0 0.0
    %v2008 = vand.u32 %v855, 4294901760
    %v2009 = vsub.f32 %v855, %v2008
    %v2010 = vand.u32 %v2009, 4294901760
    %2011 = vmatpush1.msra.mxu0 %v2010
    %2012 = vmatprep.subr.mxu0 0.0
    %v2013 = vand.u32 %v856, 4294901760
    %v2014 = vsub.f32 %v856, %v2013
    %v2015 = vand.u32 %v2014, 4294901760
    %2016 = vmatpush1.msra.mxu0 %v2015
    %2017 = vmatprep.subr.mxu0 0.0
    %v2018 = vand.u32 %v857, 4294901760
    %v2019 = vsub.f32 %v857, %v2018
    %v2020 = vand.u32 %v2019, 4294901760
    %2021 = vmatpush1.msra.mxu0 %v2020
    %2022 = vmatprep.subr.mxu0 0.0
    %v2023 = vand.u32 %v858, 4294901760
    %v2024 = vsub.f32 %v858, %v2023
    %v2025 = vand.u32 %v2024, 4294901760
    %2026 = vmatpush1.msra.mxu0 %v2025
    %2027 = vmatprep.subr.mxu0 0.0
    %v2028 = vand.u32 %v859, 4294901760
    %v2029 = vsub.f32 %v859, %v2028
    %v2030 = vand.u32 %v2029, 4294901760
    %2031 = vmatpush1.msra.mxu0 %v2030
    %2032 = vmatprep.subr.mxu0 0.0
    %2033 = vmatpush1.msra.mxu0 0.0
    %2034 = vmatprep.subr.mxu0 0.0
    %2035 = vmatpush1.msra.mxu0 0.0
    %2036 = vmatprep.subr.mxu0 0.0
    %2037 = vmatpush1.msra.mxu0 0.0
    %2038 = vmatprep.subr.mxu0 0.0
    %2039 = vmatpush1.msra.mxu0 0.0
    %2040 = vmatprep.subr.mxu0 0.0
    %2041 = vmatpush1.msra.mxu0 0.0
    %2042 = vmatprep.subr.mxu0 0.0
    %2043 = vmatpush1.msra.mxu0 0.0
    %2044 = vmatprep.subr.mxu0 0.0
    %2045 = vmatpush1.msra.mxu0 0.0
    %2046 = vmatprep.subr.mxu0 0.0
    %2047 = vmatpush1.msra.mxu0 0.0
    %2048 = vmatprep.subr.mxu0 0.0
    %2049 = vmatpush1.msra.mxu0 0.0
    %2050 = vmatprep.subr.mxu0 0.0
    %2051 = vmatpush1.msra.mxu0 0.0
    %2052 = vmatprep.subr.mxu0 0.0
    %2053 = vmatpush1.msra.mxu0 0.0
    %2054 = vmatprep.subr.mxu0 0.0
    %2055 = vmatpush1.msra.mxu0 0.0
    %2056 = vmatprep.subr.mxu0 0.0
    %2057 = vmatpush1.msra.mxu0 0.0
    %2058 = vmatprep.subr.mxu0 0.0
    %2059 = vmatpush1.msra.mxu0 0.0
    %2060 = vmatprep.subr.mxu0 0.0
    %2061 = vmatpush1.msra.mxu0 0.0
    %2062 = vmatprep.subr.mxu0 0.0
    %2063 = vmatpush1.msra.mxu0 0.0
    %2064 = vmatprep.mubr.f32.mxu0 0.0
    %v2065 = vand.u32 %v740, 4294901760
    %2066 = vmatmul.mubr.f32.gmra.mrb[0].mxu0 %v2065
    %v2067 = vpop.f32.mrb[0].mxu0
    %v2068 = vadd.f32 %v1949, %v2067
    %v2069 = vpop.f32.mrb[0].mxu0
    %2070 = vdwg.mxu0
    %2071 = vmatprep.subr.mxu0 0.0
    %v2072 = vand.u32 %v844, 4294901760
    %2073 = vmatpush1.msra.mxu0 %v2072
    %2074 = vmatprep.subr.mxu0 0.0
    %v2075 = vand.u32 %v845, 4294901760
    %2076 = vmatpush1.msra.mxu0 %v2075
    %2077 = vmatprep.subr.mxu0 0.0
    %v2078 = vand.u32 %v846, 4294901760
    %2079 = vmatpush1.msra.mxu0 %v2078
    %2080 = vmatprep.subr.mxu0 0.0
    %v2081 = vand.u32 %v847, 4294901760
    %2082 = vmatpush1.msra.mxu0 %v2081
    %2083 = vmatprep.subr.mxu0 0.0
    %v2084 = vand.u32 %v848, 4294901760
    %2085 = vmatpush1.msra.mxu0 %v2084
    %2086 = vmatprep.subr.mxu0 0.0
    %v2087 = vand.u32 %v849, 4294901760
    %2088 = vmatpush1.msra.mxu0 %v2087
    %2089 = vmatprep.subr.mxu0 0.0
    %v2090 = vand.u32 %v850, 4294901760
    %2091 = vmatpush1.msra.mxu0 %v2090
    %2092 = vmatprep.subr.mxu0 0.0
    %v2093 = vand.u32 %v851, 4294901760
    %2094 = vmatpush1.msra.mxu0 %v2093
    %2095 = vmatprep.subr.mxu0 0.0
    %v2096 = vand.u32 %v852, 4294901760
    %2097 = vmatpush1.msra.mxu0 %v2096
    %2098 = vmatprep.subr.mxu0 0.0
    %v2099 = vand.u32 %v853, 4294901760
    %2100 = vmatpush1.msra.mxu0 %v2099
    %2101 = vmatprep.subr.mxu0 0.0
    %v2102 = vand.u32 %v854, 4294901760
    %2103 = vmatpush1.msra.mxu0 %v2102
    %2104 = vmatprep.subr.mxu0 0.0
    %v2105 = vand.u32 %v855, 4294901760
    %2106 = vmatpush1.msra.mxu0 %v2105
    %2107 = vmatprep.subr.mxu0 0.0
    %v2108 = vand.u32 %v856, 4294901760
    %2109 = vmatpush1.msra.mxu0 %v2108
    %2110 = vmatprep.subr.mxu0 0.0
    %v2111 = vand.u32 %v857, 4294901760
    %2112 = vmatpush1.msra.mxu0 %v2111
    %2113 = vmatprep.subr.mxu0 0.0
    %v2114 = vand.u32 %v858, 4294901760
    %2115 = vmatpush1.msra.mxu0 %v2114
    %2116 = vmatprep.subr.mxu0 0.0
    %v2117 = vand.u32 %v859, 4294901760
    %2118 = vmatpush1.msra.mxu0 %v2117
    %2119 = vmatprep.subr.mxu0 0.0
    %2120 = vmatpush1.msra.mxu0 0.0
    %2121 = vmatprep.subr.mxu0 0.0
    %2122 = vmatpush1.msra.mxu0 0.0
    %2123 = vmatprep.subr.mxu0 0.0
    %2124 = vmatpush1.msra.mxu0 0.0
    %2125 = vmatprep.subr.mxu0 0.0
    %2126 = vmatpush1.msra.mxu0 0.0
    %2127 = vmatprep.subr.mxu0 0.0
    %2128 = vmatpush1.msra.mxu0 0.0
    %2129 = vmatprep.subr.mxu0 0.0
    %2130 = vmatpush1.msra.mxu0 0.0
    %2131 = vmatprep.subr.mxu0 0.0
    %2132 = vmatpush1.msra.mxu0 0.0
    %2133 = vmatprep.subr.mxu0 0.0
    %2134 = vmatpush1.msra.mxu0 0.0
    %2135 = vmatprep.subr.mxu0 0.0
    %2136 = vmatpush1.msra.mxu0 0.0
    %2137 = vmatprep.subr.mxu0 0.0
    %2138 = vmatpush1.msra.mxu0 0.0
    %2139 = vmatprep.subr.mxu0 0.0
    %2140 = vmatpush1.msra.mxu0 0.0
    %2141 = vmatprep.subr.mxu0 0.0
    %2142 = vmatpush1.msra.mxu0 0.0
    %2143 = vmatprep.subr.mxu0 0.0
    %2144 = vmatpush1.msra.mxu0 0.0
    %2145 = vmatprep.subr.mxu0 0.0
    %2146 = vmatpush1.msra.mxu0 0.0
    %2147 = vmatprep.subr.mxu0 0.0
    %2148 = vmatpush1.msra.mxu0 0.0
    %2149 = vmatprep.subr.mxu0 0.0
    %2150 = vmatpush1.msra.mxu0 0.0
    %2151 = vmatprep.mubr.f32.mxu0 0.0
    %v2152 = vand.u32 %v740, 4294901760
    %2153 = vmatmul.mubr.f32.gmra.mrb[0].mxu0 %v2152
    %v2154 = vpop.f32.mrb[0].mxu0
    %v2155 = vadd.f32 %v2068, %v2154
    %v2156 = vpop.f32.mrb[0].mxu0
    %2157 = vdwg.mxu0
    %2158 = vst [vmem:[#allocation10] sm:$0xff] %v2155
    // Predicated region
    $region34: #{tpu_custom_call.1} parent=1 // pred_check
      _
    $region35: #{tpu_custom_call.1} parent=1 // pred_check_branch
      %2160 = sbr.rel (0) target = $region37
    $region36: #{tpu_custom_call.1} parent=1 // pred_region
      %s2162 = ssub.s32 128, 128
      %2163 = vsyncadd [#allocation4], %s2162
      %s2165 = sshll.u32 [#allocation10], 4
      %s2166 = int_to_ptr.vmem [resolvable:$true] %s2165
      %2168 = dma.vmem_to_hbm [thread:$0]  %s2166, 128, %s4, [#allocation4]
    $region37: #{tpu_custom_call.1} parent=1 // pred_fallthru
      _
    // Predicated region
    $region38: #{tpu_custom_call.1} parent=1 // pred_check
      _
    $region39: #{tpu_custom_call.1} parent=1 // pred_check_branch
      %2170 = sbr.rel (0) target = $region41
    $region40: #{tpu_custom_call.1} parent=1 // pred_region
      %2171 = dma.done [#allocation4], 128
    $region41: #{tpu_custom_call.1} parent=1 // pred_fallthru
      _
    %2172 = vsyncpa [#allocation3], 1
    %2173 = vsyncpa [#allocation6], 1
    %2174 = vsyncpa [#allocation9], 1
    %2175 = vsyncpa [#allocation4], 1

</llo_original>
